<compile_context>
chip_gen: v6e
topology: v6e:2x2x1
jax: 0.10.0
libtpu: 0.0.40
codegen_flags: <defaults>
</compile_context>

<pallas_src>
import functools

import jax
import jax.numpy as jnp
from jax import lax
from jax.experimental import pallas as pl
from jax.experimental.pallas import tpu as pltpu

LEAKY_SLOPE = 0.01  # nn.LeakyReLU default


def _leaky(x):
    return jnp.where(x >= 0, x, LEAKY_SLOPE * x)


def _shift_down(x):
    """y[t] = x[t-1], y[0] = 0  (the conv's left zero pad), without an HBM pad."""
    r = pltpu.roll(x, shift=1, axis=0)
    idx = lax.broadcasted_iota(jnp.int32, x.shape, 0)
    return jnp.where(idx >= 1, r, jnp.zeros_like(x))


def _shift_up(x):
    """y[t] = x[t+1], y[n-1] = 0  (the conv's right zero pad)."""
    n = x.shape[0]
    r = pltpu.roll(x, shift=n - 1, axis=0)
    idx = lax.broadcasted_iota(jnp.int32, x.shape, 0)
    return jnp.where(idx < n - 1, r, jnp.zeros_like(x))


def _round_up(x, m):
    return -(-x // m) * m


def _tpu_kind():
    try:
        return jax.devices()[0].device_kind.lower()
    except Exception:  # pragma: no cover
        return ""


def _vmem_cap_bytes(kind):
    # 128 MiB physical on v5e/v6e -> 96 MiB budget; 64 MiB physical on v7x (and as a
    # conservative default) -> 44 MiB budget (>=25% headroom).
    if ("v5" in kind) or ("v6" in kind):
        return 96 << 20
    return 44 << 20


# ----------------------------------------------------------------------------- kernels
def _text_encoder_kernel(x_ref, w1_ref, b1_ref, w2_ref, b2_ref, emb_ref, norm_ref):
    # x: (1, S, 256) f32; w1: (3, 256, 512) bf16; b1: (1, 512) f32;
    # w2: (512, 128) bf16 (out channels zero-padded 80->128); b2: (1, 128) f32.
    x = x_ref[0]                                                   # (S, 256) f32
    xm1 = _shift_down(x)                                           # x[t-1]
    xp1 = _shift_up(x)                                             # x[t+1]
    # Conv1d(k=3, pad=1): three K=256 MXU dots summed (no (S,768) im2col copy).
    h = (jnp.dot(xm1.astype(jnp.bfloat16), w1_ref[0], preferred_element_type=jnp.float32)
         + jnp.dot(x.astype(jnp.bfloat16), w1_ref[1], preferred_element_type=jnp.float32)
         + jnp.dot(xp1.astype(jnp.bfloat16), w1_ref[2], preferred_element_type=jnp.float32)
         + b1_ref[...])
    h = jnp.maximum(h, 0.0)                                        # ReLU (f32)
    y = jnp.dot(h.astype(jnp.bfloat16), w2_ref[...],
                preferred_element_type=jnp.float32) + b2_ref[...]  # (S, 128)
    yb = y.astype(jnp.bfloat16)
    emb_ref[0] = yb                                                # bf16 embedding
    yf = yb.astype(jnp.float32)
    norm_ref[0] = jnp.sum(yf * yf, axis=-1, keepdims=True)         # (S, 1) ||x||^2


def _mel_encoder_kernel(x_ref, w1_ref, b1_ref, w2_ref, b2_ref, w3_ref, b3_ref,
                        emb_ref, norm_ref):
    # x: (1, T, 80) f32; w1: (3, 80, 160) bf16; w2: (3, 160, 128) bf16 (out padded);
    # w3: (128, 128) bf16 (in+out padded 80->128); biases f32 (padded where needed).
    x = x_ref[0]                                                   # (T, 80) f32
    xm1 = _shift_down(x)
    xp1 = _shift_up(x)
    h = (jnp.dot(xm1.astype(jnp.bfloat16), w1_ref[0], preferred_element_type=jnp.float32)
         + jnp.dot(x.astype(jnp.bfloat16), w1_ref[1], preferred_element_type=jnp.float32)
         + jnp.dot(xp1.astype(jnp.bfloat16), w1_ref[2], preferred_element_type=jnp.float32)
         + b1_ref[...])
    h = _leaky(h)                                                  # (T, 160) f32
    hm1 = _shift_down(h)                                           # conv2's zero padding of
    hp1 = _shift_up(h)                                             # the activation, exactly
    g = (jnp.dot(hm1.astype(jnp.bfloat16), w2_ref[0], preferred_element_type=jnp.float32)
         + jnp.dot(h.astype(jnp.bfloat16), w2_ref[1], preferred_element_type=jnp.float32)
         + jnp.dot(hp1.astype(jnp.bfloat16), w2_ref[2], preferred_element_type=jnp.float32)
         + b2_ref[...])
    g = _leaky(g)                                                  # (T, 128) lane-dense
    y = jnp.dot(g.astype(jnp.bfloat16), w3_ref[...],
                preferred_element_type=jnp.float32) + b3_ref[...]  # (T, 128)
    yb = y.astype(jnp.bfloat16)
    emb_ref[0] = yb
    yf = yb.astype(jnp.float32)
    ones = jnp.ones((1, yf.shape[1]), jnp.float32)
    # lane-dense (1, T) row of ||y||^2 via a 1-row MXU dot (hoisted out of alignment).
    norm_ref[0] = lax.dot_general(ones, yf * yf, (((1,), (1,)), ((), ())),
                                  preferred_element_type=jnp.float32)


def _alignment_kernel(src_len_ref, mel_len_ref,                     # scalar-prefetch (SMEM)
                      xnorm_ref, temb_ref, ynorm_ref, memb_ref,
                      soft_ref, *, bf16_eup):
    b = pl.program_id(0)
    jt = pl.program_id(1)
    x = temb_ref[0]                                    # (S, 128) bf16
    y = memb_ref[0]                                    # (tT, 128) bf16
    xx = xnorm_ref[0]                                  # (S, 1) f32
    yy = ynorm_ref[0]                                  # (1, tT) f32
    S = x.shape[0]
    tT = y.shape[0]

    # torch.cdist(p=2) in matmul form: ||x||^2 + ||y||^2 - 2 x.y  (MXU, norms hoisted).
    xy = lax.dot_general(x, y, (((1,), (1,)), ((), ())),
                         preferred_element_type=jnp.float32)        # (S, tT)
    d2 = jnp.maximum(xx + yy - 2.0 * xy, 0.0)
    if bf16_eup:
        neg = -jnp.sqrt(d2.astype(jnp.bfloat16)).astype(jnp.float32)
    else:
        neg = -jnp.sqrt(d2)                                         # -dist

    # validity from lengths, built from an (S,1) row mask & a (1,tT) col mask
    # (subsumes the embedding masked_fill: any entry touching a padded row/col is invalid).
    slen = src_len_ref[b]
    mlen = mel_len_ref[b]
    row_valid = lax.broadcasted_iota(jnp.int32, (S, 1), 0) < slen
    col_valid = (lax.broadcasted_iota(jnp.int32, (1, tT), 1) + jt * tT) < mlen
    valid = row_valid & col_valid                                   # broadcast AND

    # masked softmax over the src axis (dim=1), then masked_fill(0) (exp(-inf)=0).
    logits = jnp.where(valid, neg, -jnp.inf)
    m = jnp.max(logits, axis=0, keepdims=True)
    m = jnp.where(m > -jnp.inf, m, 0.0)                # fully-masked columns -> safe
    arg = logits - m
    if bf16_eup:
        e = jnp.exp(arg.astype(jnp.bfloat16)).astype(jnp.float32)
    else:
        e = jnp.exp(arg)
    denom = jnp.sum(e, axis=0, keepdims=True)
    inv = pl.reciprocal(jnp.where(denom > 0.0, denom, 1.0), approx=True)
    soft_ref[0] = (e * inv).astype(soft_ref.dtype)


# ----------------------------------------------------------------------------- wrappers
def text_encoder(text, params, *, vmem_limit):
    B, S, _ = text.shape
    w1 = params["t_w1"].astype(jnp.bfloat16)                       # (3, 256, 512)
    b1 = params["t_b1"].astype(jnp.float32)
    w2 = jnp.pad(params["t_w2"], ((0, 0), (0, 48))).astype(jnp.bfloat16)   # 80 -> 128
    b2 = jnp.pad(params["t_b2"], ((0, 0), (0, 48))).astype(jnp.float32)
    # TODO(synk): for very long S (or B==1 on 2-TC v7x) add a sequence-tile grid axis
    # with a 1-row halo for the k=3 conv.
    return pl.pallas_call(
        _text_encoder_kernel,
        out_shape=(jax.ShapeDtypeStruct((B, S, 128), jnp.bfloat16),
                   jax.ShapeDtypeStruct((B, S, 1), jnp.float32)),
        grid=(B,),
        in_specs=[
            pl.BlockSpec((1, S, 256), lambda b: (b, 0, 0)),
            pl.BlockSpec((3, 256, 512), lambda b: (0, 0, 0)),
            pl.BlockSpec((1, 512), lambda b: (0, 0)),
            pl.BlockSpec((512, 128), lambda b: (0, 0)),
            pl.BlockSpec((1, 128), lambda b: (0, 0)),
        ],
        out_specs=[pl.BlockSpec((1, S, 128), lambda b: (b, 0, 0)),
                   pl.BlockSpec((1, S, 1), lambda b: (b, 0, 0))],
        compiler_params=pltpu.CompilerParams(
            dimension_semantics=("parallel",), vmem_limit_bytes=vmem_limit),
    )(text, w1, b1, w2, b2)


def mel_encoder(mel, params, *, vmem_limit):
    B, T, _ = mel.shape
    w1 = params["m_w1"].astype(jnp.bfloat16)                       # (3, 80, 160)
    b1 = params["m_b1"].astype(jnp.float32)
    # lane-dense internals: conv2 output & 1x1 conv channels zero-padded 80 -> 128
    w2 = jnp.pad(params["m_w2"], ((0, 0), (0, 0), (0, 48))).astype(jnp.bfloat16)
    b2 = jnp.pad(params["m_b2"], ((0, 0), (0, 48))).astype(jnp.float32)
    w3 = jnp.pad(params["m_w3"], ((0, 48), (0, 48))).astype(jnp.bfloat16)
    b3 = jnp.pad(params["m_b3"], ((0, 0), (0, 48))).astype(jnp.float32)
    return pl.pallas_call(
        _mel_encoder_kernel,
        out_shape=(jax.ShapeDtypeStruct((B, T, 128), jnp.bfloat16),
                   jax.ShapeDtypeStruct((B, 1, T), jnp.float32)),
        grid=(B,),
        in_specs=[
            pl.BlockSpec((1, T, 80), lambda b: (b, 0, 0)),
            pl.BlockSpec((3, 80, 160), lambda b: (0, 0, 0)),
            pl.BlockSpec((1, 160), lambda b: (0, 0)),
            pl.BlockSpec((3, 160, 128), lambda b: (0, 0, 0)),
            pl.BlockSpec((1, 128), lambda b: (0, 0)),
            pl.BlockSpec((128, 128), lambda b: (0, 0)),
            pl.BlockSpec((1, 128), lambda b: (0, 0)),
        ],
        out_specs=[pl.BlockSpec((1, T, 128), lambda b: (b, 0, 0)),
                   pl.BlockSpec((1, 1, T), lambda b: (b, 0, 0))],
        compiler_params=pltpu.CompilerParams(
            dimension_semantics=("parallel",), vmem_limit_bytes=vmem_limit),
    )(mel, w1, b1, w2, b2, w3, b3)


def _choose_alignment_tiling(S, T, max_t_tile, vmem_cap):
    """Pad T up to a multiple of the chosen tile (NOT gcd), shrink tile to fit VMEM."""
    tT = min(max_t_tile, _round_up(T, 128))

    def budget(t):
        out = 2 * S * t * 4            # double-buffered f32 output block
        memb = 2 * t * 128 * 2         # double-buffered bf16 memb block
        temb = 2 * S * 128 * 2         # double-buffered bf16 temb block
        norms = 2 * (S * 4 + t * 4)
        interm = 5 * S * t * 4         # xy / neg / logits / e / valid live slabs
        return out + memb + temb + norms + interm + (2 << 20)

    while tT > 128 and budget(tT) > vmem_cap:
        tT -= 128
    Tp = _round_up(T, tT)
    vmem_limit = int(min(vmem_cap, max(budget(tT) * 5 // 4, 32 << 20)))
    return tT, Tp, vmem_limit


def alignment_soft(text_emb, xnorm, mel_emb, ynorm, src_len, mel_len, *, max_t_tile=1024):
    B, S, D = text_emb.shape            # D = 128 (80 real + 48 zero channels)
    T = mel_emb.shape[1]
    kind = _tpu_kind()
    cap = _vmem_cap_bytes(kind)
    bf16_eup = ("v6" in kind) or ("v7" in kind)   # bf16 EUP only where it exists
    tT, Tp, vmem_limit = _choose_alignment_tiling(S, T, max_t_tile, cap)
    if Tp != T:
        mel_emb = jnp.pad(mel_emb, ((0, 0), (0, Tp - T), (0, 0)))
        ynorm = jnp.pad(ynorm, ((0, 0), (0, 0), (0, Tp - T)))
    kernel = functools.partial(_alignment_kernel, bf16_eup=bf16_eup)
    soft = pl.pallas_call(
        kernel,
        out_shape=jax.ShapeDtypeStruct((B, S, Tp), jnp.float32),
        grid_spec=pltpu.PrefetchScalarGridSpec(
            num_scalar_prefetch=2,
            grid=(B, Tp // tT),
            in_specs=[
                pl.BlockSpec((1, S, 1), lambda b, jt, sl, ml: (b, 0, 0)),
                pl.BlockSpec((1, S, D), lambda b, jt, sl, ml: (b, 0, 0)),
                pl.BlockSpec((1, 1, tT), lambda b, jt, sl, ml: (b, 0, jt)),
                pl.BlockSpec((1, tT, D), lambda b, jt, sl, ml: (b, jt, 0)),
            ],
            out_specs=pl.BlockSpec((1, S, tT), lambda b, jt, sl, ml: (b, 0, jt)),
        ),
        compiler_params=pltpu.CompilerParams(
            dimension_semantics=("parallel", "parallel"),
            vmem_limit_bytes=vmem_limit),
    )(src_len.astype(jnp.int32), mel_len.astype(jnp.int32),
      xnorm, text_emb, ynorm, mel_emb)
    return soft[:, :, :T] if Tp != T else soft


# TODO(synk): maximum_path is a sequential Viterbi DP with data-dependent backtracking;
# it has no clean tiled Pallas formulation, so it is implemented in plain JAX below
# (direction kept as bool; the redundant `value * mask` HBM pass is dropped because
# soft_A is already exactly zero outside mask_ST).
def maximum_path_jax(value, mask):
    """Glow-TTS `maximum_path` (numpy variant) via lax.scan. value/mask: (B, S, T)."""
    B, S, T = value.shape
    neg_inf = -jnp.inf
    x_range = jnp.arange(S, dtype=jnp.int32)[None, :]            # (1, S)

    def fwd(v, inp):
        vcol, j = inp                                            # (B, S), scalar j
        v0 = jnp.concatenate(
            [jnp.full((B, 1), neg_inf, v.dtype), v[:, :-1]], axis=1)
        max_mask = v >= v0                                       # bool direction
        v_max = jnp.where(max_mask, v, v0)
        v_new = jnp.where(x_range <= j, v_max + vcol, neg_inf)
        return v_new, max_mask

    _, direction = lax.scan(
        fwd, jnp.zeros((B, S), jnp.float32),
        (jnp.moveaxis(value, 2, 0), jnp.arange(T, dtype=jnp.int32)))
    direction = jnp.moveaxis(direction, 0, 2)                    # (B, S, T) bool
    direction = jnp.where(mask > 0, direction, True)

    index0 = jnp.sum(mask[:, :, 0], axis=1).astype(jnp.int32) - 1  # src_len - 1

    def bwd(index, dir_col):                                       # dir_col: (B, S) bool
        onehot = jax.nn.one_hot(index, S, dtype=value.dtype)
        d = jnp.take_along_axis(dir_col, index[:, None], axis=1)[:, 0]
        return index + d.astype(jnp.int32) - 1, onehot

    _, path_rev = lax.scan(bwd, index0, jnp.moveaxis(direction, 2, 0)[::-1])
    path = jnp.moveaxis(path_rev[::-1], 0, 2)                      # (B, S, T)
    return path * mask


def internal_aligner_forward(params, text, mel, src_len, mel_len,
                             src_mask, mel_mask, attn_mask):
    # attn_mask is accepted for parity with the PyTorch signature but unused there too.
    # src_mask/mel_mask (True=padding) are subsumed by src_len/mel_len: every soft_A
    # entry that could depend on a masked embedding is zeroed by mask_ST anyway.
    del attn_mask, src_mask, mel_mask
    cap = _vmem_cap_bytes(_tpu_kind())
    text_emb, xnorm = text_encoder(text, params, vmem_limit=cap)   # (B,S,128) bf16, (B,S,1)
    mel_emb, ynorm = mel_encoder(mel, params, vmem_limit=cap)      # (B,T,128) bf16, (B,1,T)
    soft_A = alignment_soft(text_emb, xnorm, mel_emb, ynorm, src_len, mel_len)  # (B,S,T)

    S, T = text.shape[1], mel.shape[1]
    ii = jnp.arange(S)[None, :, None]
    jj = jnp.arange(T)[None, None, :]
    mask_ST = ((ii < src_len[:, None, None]) &
               (jj < mel_len[:, None, None])).astype(jnp.float32)   # (B, S, T)
    mask_ST_rev = mask_ST == 0
    hard_A = maximum_path_jax(soft_A, mask_ST)
    return soft_A, hard_A, mask_ST_rev


# ----------------------------------------------------------------------------- params
def init_params(key):
    # Shapes mirror the PyTorch module; k=3 conv weights stored as (k, Cin, Cout),
    # i.e. torch weight (Cout, Cin, k) transposed to (k, Cin, Cout); 1x1 as (Cin, Cout).
    ks = jax.random.split(key, 10)
    w = lambda k, shape, s=0.05: s * jax.random.normal(k, shape, jnp.float32)
    return {
        "t_w1": w(ks[0], (3, 256, 512)), "t_b1": w(ks[1], (1, 512)),
        "t_w2": w(ks[2], (512, 80)),     "t_b2": w(ks[3], (1, 80)),
        "m_w1": w(ks[4], (3, 80, 160)),  "m_b1": w(ks[5], (1, 160)),
        "m_w2": w(ks[6], (3, 160, 80)),  "m_b2": w(ks[7], (1, 80)),
        "m_w3": w(ks[8], (80, 80)),      "m_b3": w(ks[9], (1, 80)),
    }


if __name__ == "__main__":
    key = jax.random.PRNGKey(0)
    kp, kt, km = jax.random.split(key, 3)
    params = init_params(kp)

    B, S, T = 2, 8, 16                                   # batch, src_max_len, mel_max_len
    text = jax.random.normal(kt, (B, S, 256), jnp.float32)
    mel = jax.random.normal(km, (B, T, 80), jnp.float32)
    src_len = jnp.array([8, 5], jnp.int32)
    mel_len = jnp.array([16, 11], jnp.int32)
    src_mask = jnp.arange(S)[None, :] >= src_len[:, None]    # True = padding
    mel_mask = jnp.arange(T)[None, :] >= mel_len[:, None]
    attn_mask = src_mask[:, :, None] | mel_mask[:, None, :]  # unused (parity with torch)

    soft_A, hard_A, mask_ST_rev = internal_aligner_forward(
        params, text, mel, src_len, mel_len, src_mask, mel_mask, attn_mask)
    jax.block_until_ready((soft_A, hard_A, mask_ST_rev))
    print("KERNEL_OK")
</pallas_src>

<mosaic_0001>
module attributes {stable_mosaic.version = 11 : i64} {
  func.func @_text_encoder_kernel(%arg0: i32, %arg1: memref<1x8x256xf32, #tpu.memory_space<vmem>>, %arg2: memref<3x256x512xbf16, #tpu.memory_space<vmem>>, %arg3: memref<1x512xf32, #tpu.memory_space<vmem>>, %arg4: memref<512x128xbf16, #tpu.memory_space<vmem>>, %arg5: memref<1x128xf32, #tpu.memory_space<vmem>>, %arg6: memref<1x8x128xbf16, #tpu.memory_space<vmem>>, %arg7: memref<1x8x1xf32, #tpu.memory_space<vmem>>) attributes {dimension_semantics = [#tpu.dimension_semantics<parallel>], iteration_bounds = array<i64: 2>, scalar_prefetch = 0 : i64, scratch_operands = 0 : i64, tpu.core_type = #tpu.core_type<tc>, window_params = [{transform_indices = @transform_0, window_bounds = array<i64: 1, 8, 256>}, {pipeline_mode = #tpu.pipeline_mode<synchronous>, transform_indices = @transform_1, window_bounds = array<i64: 3, 256, 512>}, {pipeline_mode = #tpu.pipeline_mode<synchronous>, transform_indices = @transform_2, window_bounds = array<i64: 1, 512>}, {pipeline_mode = #tpu.pipeline_mode<synchronous>, transform_indices = @transform_3, window_bounds = array<i64: 512, 128>}, {pipeline_mode = #tpu.pipeline_mode<synchronous>, transform_indices = @transform_4, window_bounds = array<i64: 1, 128>}, {transform_indices = @transform_5, window_bounds = array<i64: 1, 8, 128>}, {transform_indices = @transform_6, window_bounds = array<i64: 1, 8, 1>}]} {
    %c0 = arith.constant 0 : index
    %c0_0 = arith.constant 0 : index
    %c0_1 = arith.constant 0 : index
    %0 = vector.load %arg1[%c0, %c0_0, %c0_1] : memref<1x8x256xf32, #tpu.memory_space<vmem>>, vector<1x8x256xf32>
    %1 = vector.shape_cast %0 : vector<1x8x256xf32> to vector<8x256xf32>
    %c1_i32 = arith.constant 1 : i32
    %2 = tpu.dynamic_rotate %1 by %c1_i32 dim 0 : vector<8x256xf32>, i32 -> vector<8x256xf32>
    %3 = tpu.iota {dimensions = array<i32: 0>} : vector<8x256xi32>
    %c1_i32_2 = arith.constant 1 : i32
    %4 = vector.broadcast %c1_i32_2 : i32 to vector<8x256xi32>
    %5 = arith.cmpi sge, %3, %4 : vector<8x256xi32>
    %cst = arith.constant 0.000000e+00 : f32
    %6 = vector.broadcast %cst : f32 to vector<8x256xf32>
    %7 = arith.select %5, %2, %6 : vector<8x256xi1>, vector<8x256xf32>
    %c7_i32 = arith.constant 7 : i32
    %8 = tpu.dynamic_rotate %1 by %c7_i32 dim 0 : vector<8x256xf32>, i32 -> vector<8x256xf32>
    %9 = tpu.iota {dimensions = array<i32: 0>} : vector<8x256xi32>
    %c7_i32_3 = arith.constant 7 : i32
    %10 = vector.broadcast %c7_i32_3 : i32 to vector<8x256xi32>
    %11 = arith.cmpi slt, %9, %10 : vector<8x256xi32>
    %cst_4 = arith.constant 0.000000e+00 : f32
    %12 = vector.broadcast %cst_4 : f32 to vector<8x256xf32>
    %13 = arith.select %11, %8, %12 : vector<8x256xi1>, vector<8x256xf32>
    %14 = arith.truncf %7 : vector<8x256xf32> to vector<8x256xbf16>
    %c0_5 = arith.constant 0 : index
    %c0_6 = arith.constant 0 : index
    %c0_7 = arith.constant 0 : index
    %15 = vector.load %arg2[%c0_5, %c0_6, %c0_7] : memref<3x256x512xbf16, #tpu.memory_space<vmem>>, vector<1x256x512xbf16>
    %16 = vector.shape_cast %15 : vector<1x256x512xbf16> to vector<256x512xbf16>
    %cst_8 = arith.constant dense<0.000000e+00> : vector<8x512xf32>
    %17 = tpu.matmul %14, %16, %cst_8 {dimension_numbers = #tpu.dot_dimension_numbers<[1], [0], [0], [1], [0, 0, 1, 1], [], []>} : vector<8x256xbf16>, vector<256x512xbf16>, vector<8x512xf32> -> vector<8x512xf32>
    %18 = arith.truncf %1 : vector<8x256xf32> to vector<8x256xbf16>
    %c1 = arith.constant 1 : index
    %c0_9 = arith.constant 0 : index
    %c0_10 = arith.constant 0 : index
    %19 = vector.load %arg2[%c1, %c0_9, %c0_10] : memref<3x256x512xbf16, #tpu.memory_space<vmem>>, vector<1x256x512xbf16>
    %20 = vector.shape_cast %19 : vector<1x256x512xbf16> to vector<256x512xbf16>
    %cst_11 = arith.constant dense<0.000000e+00> : vector<8x512xf32>
    %21 = tpu.matmul %18, %20, %cst_11 {dimension_numbers = #tpu.dot_dimension_numbers<[1], [0], [0], [1], [0, 0, 1, 1], [], []>} : vector<8x256xbf16>, vector<256x512xbf16>, vector<8x512xf32> -> vector<8x512xf32>
    %22 = arith.addf %17, %21 : vector<8x512xf32>
    %23 = arith.truncf %13 : vector<8x256xf32> to vector<8x256xbf16>
    %c2 = arith.constant 2 : index
    %c0_12 = arith.constant 0 : index
    %c0_13 = arith.constant 0 : index
    %24 = vector.load %arg2[%c2, %c0_12, %c0_13] : memref<3x256x512xbf16, #tpu.memory_space<vmem>>, vector<1x256x512xbf16>
    %25 = vector.shape_cast %24 : vector<1x256x512xbf16> to vector<256x512xbf16>
    %cst_14 = arith.constant dense<0.000000e+00> : vector<8x512xf32>
    %26 = tpu.matmul %23, %25, %cst_14 {dimension_numbers = #tpu.dot_dimension_numbers<[1], [0], [0], [1], [0, 0, 1, 1], [], []>} : vector<8x256xbf16>, vector<256x512xbf16>, vector<8x512xf32> -> vector<8x512xf32>
    %27 = arith.addf %22, %26 : vector<8x512xf32>
    %c0_15 = arith.constant 0 : index
    %c0_16 = arith.constant 0 : index
    %28 = vector.load %arg3[%c0_15, %c0_16] : memref<1x512xf32, #tpu.memory_space<vmem>>, vector<1x512xf32>
    %29 = vector.broadcast %28 : vector<1x512xf32> to vector<8x512xf32>
    %30 = arith.addf %27, %29 : vector<8x512xf32>
    %cst_17 = arith.constant 0.000000e+00 : f32
    %31 = vector.broadcast %cst_17 : f32 to vector<8x512xf32>
    %32 = arith.maximumf %30, %31 : vector<8x512xf32>
    %33 = arith.truncf %32 : vector<8x512xf32> to vector<8x512xbf16>
    %c0_18 = arith.constant 0 : index
    %c0_19 = arith.constant 0 : index
    %34 = vector.load %arg4[%c0_18, %c0_19] : memref<512x128xbf16, #tpu.memory_space<vmem>>, vector<512x128xbf16>
    %cst_20 = arith.constant dense<0.000000e+00> : vector<8x128xf32>
    %35 = tpu.matmul %33, %34, %cst_20 {dimension_numbers = #tpu.dot_dimension_numbers<[1], [0], [0], [1], [0, 0, 1, 1], [], []>} : vector<8x512xbf16>, vector<512x128xbf16>, vector<8x128xf32> -> vector<8x128xf32>
    %c0_21 = arith.constant 0 : index
    %c0_22 = arith.constant 0 : index
    %36 = vector.load %arg5[%c0_21, %c0_22] : memref<1x128xf32, #tpu.memory_space<vmem>>, vector<1x128xf32>
    %37 = vector.broadcast %36 : vector<1x128xf32> to vector<8x128xf32>
    %38 = arith.addf %35, %37 : vector<8x128xf32>
    %39 = arith.truncf %38 : vector<8x128xf32> to vector<8x128xbf16>
    %c0_23 = arith.constant 0 : index
    %c0_24 = arith.constant 0 : index
    %c0_25 = arith.constant 0 : index
    %40 = vector.load %arg6[%c0_23, %c0_24, %c0_25] : memref<1x8x128xbf16, #tpu.memory_space<vmem>>, vector<1x8x128xbf16>
    %41 = vector.shape_cast %40 : vector<1x8x128xbf16> to vector<8x128xbf16>
    %42 = vector.shape_cast %39 : vector<8x128xbf16> to vector<1x8x128xbf16>
    tpu.vector_store %arg6[%c0_23, %c0_24, %c0_25], %42 {strides = array<i32>} : memref<1x8x128xbf16, #tpu.memory_space<vmem>>, vector<1x8x128xbf16>,
    %43 = arith.extf %39 : vector<8x128xbf16> to vector<8x128xf32>
    %44 = arith.mulf %43, %43 : vector<8x128xf32>
    %cst_26 = arith.constant dense<0.000000e+00> : vector<8xf32>
    %45 = vector.multi_reduction <add>, %44, %cst_26 [1] : vector<8x128xf32> to vector<8xf32>
    %46 = vector.shape_cast %45 : vector<8xf32> to vector<8x1xf32>
    %c0_27 = arith.constant 0 : index
    %c0_28 = arith.constant 0 : index
    %c0_29 = arith.constant 0 : index
    %47 = vector.load %arg7[%c0_27, %c0_28, %c0_29] : memref<1x8x1xf32, #tpu.memory_space<vmem>>, vector<1x8x1xf32>
    %48 = vector.shape_cast %47 : vector<1x8x1xf32> to vector<8x1xf32>
    %49 = vector.shape_cast %46 : vector<8x1xf32> to vector<1x8x1xf32>
    tpu.vector_store %arg7[%c0_27, %c0_28, %c0_29], %49 {strides = array<i32>} : memref<1x8x1xf32, #tpu.memory_space<vmem>>, vector<1x8x1xf32>,
    return
  }
  func.func @transform_0(%arg0: i32) -> (i32, i32, i32) {
    %c0_i32 = arith.constant 0 : i32
    %c0_i32_0 = arith.constant 0 : i32
    %c0_i32_1 = arith.constant 0 : i32
    return %arg0, %c0_i32, %c0_i32_0 : i32, i32, i32
  }
  func.func @transform_1(%arg0: i32) -> (i32, i32, i32) {
    %c0_i32 = arith.constant 0 : i32
    %c0_i32_0 = arith.constant 0 : i32
    %c0_i32_1 = arith.constant 0 : i32
    %c0_i32_2 = arith.constant 0 : i32
    return %c0_i32, %c0_i32_0, %c0_i32_1 : i32, i32, i32
  }
  func.func @transform_2(%arg0: i32) -> (i32, i32) {
    %c0_i32 = arith.constant 0 : i32
    %c0_i32_0 = arith.constant 0 : i32
    %c0_i32_1 = arith.constant 0 : i32
    return %c0_i32, %c0_i32_0 : i32, i32
  }
  func.func @transform_3(%arg0: i32) -> (i32, i32) {
    %c0_i32 = arith.constant 0 : i32
    %c0_i32_0 = arith.constant 0 : i32
    %c0_i32_1 = arith.constant 0 : i32
    return %c0_i32, %c0_i32_0 : i32, i32
  }
  func.func @transform_4(%arg0: i32) -> (i32, i32) {
    %c0_i32 = arith.constant 0 : i32
    %c0_i32_0 = arith.constant 0 : i32
    %c0_i32_1 = arith.constant 0 : i32
    return %c0_i32, %c0_i32_0 : i32, i32
  }
  func.func @transform_5(%arg0: i32) -> (i32, i32, i32) {
    %c0_i32 = arith.constant 0 : i32
    %c0_i32_0 = arith.constant 0 : i32
    %c0_i32_1 = arith.constant 0 : i32
    return %arg0, %c0_i32, %c0_i32_0 : i32, i32, i32
  }
  func.func @transform_6(%arg0: i32) -> (i32, i32, i32) {
    %c0_i32 = arith.constant 0 : i32
    %c0_i32_0 = arith.constant 0 : i32
    %c0_i32_1 = arith.constant 0 : i32
    return %arg0, %c0_i32, %c0_i32_0 : i32, i32, i32
  }
}

</mosaic_0001>

<llo_original>
// kernel: tpu_custom_call.1
$region0: #{tpu_custom_call.1}
  #allocation0 [shape = 'u32[]', space=smem, size = 0x4, offset = 0x4, fixed_abs, tag = 'smem constant byte address 0x4 - core index']
  #allocation1 [shape = 'u32[144,128]{1,0:T(1,128)}', space=vmem, size = 0x12000, scoped, tag = 'internal scratch']
  %s0 = inlined_call_operand.hbm [shape: f32[2,8,256], index: 0, kind: input, shape index: {}]
  %s1 = inlined_call_operand.hbm [shape: bf16[3,256,512], index: 1, kind: input, shape index: {}]
  %s2 = inlined_call_operand.hbm [shape: f32[1,512], index: 2, kind: input, shape index: {}]
  %s3 = inlined_call_operand.hbm [shape: bf16[512,128], index: 3, kind: input, shape index: {}]
  %s4 = inlined_call_operand.vmem [shape: f32[1,128], index: 4, kind: input, shape index: {}]
  %s5 = inlined_call_operand.hbm [shape: bf16[2,8,128], index: 5, kind: output, shape index: {0}]
  %s6 = inlined_call_operand.vmem [shape: f32[2,8,1], index: 6, kind: output, shape index: {1}]
  %7 = xla_tuple %s5, %s6
  %s8 = sld [smem:[#allocation0]]
  $region77: #{tpu_custom_call.1} parent=0
    _
  %s10 = ssub.s32 1, %s8
  %s11 = scalar_select 0, %s10, %s8
  $region1: #{tpu_custom_call.1} parent=0
    #allocation2 [shape = 'u8[16384]{0}', space=vmem, size = 0x4000, scoped, tag = 'input window, operand 0']
    #allocation3 [shape = 's32[2]{0}', space=sflag, size = 0x8, scoped, tag = 'scoped memory for tpu_custom_call.1']
    #allocation4 [shape = 's32[2]{0}', space=sflag, size = 0x8, scoped, tag = 'scoped memory for tpu_custom_call.1']
    #allocation5 [shape = 'u8[786432]{0}', space=vmem, size = 0xc0000, scoped, tag = 'input window, operand 1, single buffered']
    #allocation6 [shape = 's32[1]{0}', space=sflag, size = 0x4, scoped, tag = 'scoped memory for tpu_custom_call.1']
    #allocation7 [shape = 'u8[2048]{0}', space=vmem, size = 0x800, scoped, tag = 'input window, operand 2, single buffered']
    #allocation8 [shape = 'u8[131072]{0}', space=vmem, size = 0x20000, scoped, tag = 'input window, operand 3, single buffered']
    #allocation9 [shape = 's32[1]{0}', space=sflag, size = 0x4, scoped, tag = 'scoped memory for tpu_custom_call.1']
    #allocation10 [shape = 'u8[4096]{0}', space=vmem, size = 0x1000, scoped, tag = 'output window, operand 0']
    %12 = vsyncpa [#allocation3], 0
    %s13 = scalar_lea.sflag [#allocation3], 1
    %14 = vsyncpa %s13, 0
    %15 = vsyncpa [#allocation6], 0
    %16 = vsyncpa [#allocation9], 0
    %17 = vsyncpa [#allocation4], 0
    %s18 = scalar_lea.sflag [#allocation4], 1
    %19 = vsyncpa %s18, 0
    loop: start=0, step=1, limit=4
    $region2: #{tpu_custom_call.1} parent=1 // loop_pre_header
      _
    $region3: #{tpu_custom_call.1} parent=1 // loop_header
      %s21 = sphi 0, %s25
      %p22 = scmp.ge.s32.totalorder %s21, 4
      %s31 = sphi 0, %s33
      %s34 = sphi 0, %s31
      %s35 = sphi 0, %s34
      %s51 = sphi 0, %s35
      %s55 = sphi 0, %s55
      %s57 = sphi 0, %s55
      %s58 = sphi 0, %s57
      %s72 = sphi 0, %s58
      %s76 = sphi 0, %s76
      %s78 = sphi 0, %s76
      %s79 = sphi 0, %s78
      %s93 = sphi 0, %s79
      %s97 = sphi 0, %s97
      %s99 = sphi 0, %s97
      %s100 = sphi 0, %s99
      %s114 = sphi 0, %s100
      %s118 = sphi 0, %s118
      %s120 = sphi 0, %s118
      %s121 = sphi 0, %s120
      %s135 = sphi 0, %s121
      %s141 = sphi 0, %s143
      %s144 = sphi 0, %s141
      %s145 = sphi 0, %s144
      %s161 = sphi 0, %s145
      %s167 = sphi 0, %s169
      %s170 = sphi 0, %s167
      %s171 = sphi 0, %s170
      %s187 = sphi 0, %s171
    $region4: #{tpu_custom_call.1} parent=1 // loop_header_branch
      %24 = sbr.rel (%p22) target = $region8
    $region5: #{tpu_custom_call.1} parent=1 // loop_body
      %s26 = ssub.s32 %s21, 1
      %s27 = ssub.s32 %s21, 2
      %s28 = sadd.s32 %s21, 1
      %s29 = ssub.s32 %s21, %s28
      %p30 = scmp.eq.s32.totalorder %s29, 0
      %s32 = sadd.s32 %s31, 1
      %s33 = scalar_select %p30, %s31, %s32
      %p36 = pneg %p30
      %p37 = scmp.eq.s32.totalorder %s21, 1
      %p38 = por %p36, %p37
      %p39 = scmp.ne.s32.totalorder %s31, %s34
      %p40 = scmp.eq.s32.totalorder %s21, 0
      %p41 = por %p39, %p40
      %p42 = scmp.ne.s32.totalorder %s31, %s34
      %p43 = scmp.eq.s32.totalorder %s26, 1
      %p44 = por %p42, %p43
      %p45 = scmp.ne.s32.totalorder %s34, %s35
      %p46 = scmp.eq.s32.totalorder %s26, 0
      %p47 = por %p45, %p46
      %p48 = scmp.ne.s32.totalorder %s34, %s35
      %p49 = scmp.eq.s32.totalorder %s27, 1
      %p50 = por %p48, %p49
      %p52 = scmp.ne.s32.totalorder %s35, %s51
      %p53 = scmp.eq.s32.totalorder %s27, 0
      %p54 = por %p52, %p53
      %s56 = sadd.s32 %s55, 1
      %p59 = scmp.eq.s32.totalorder %s21, 1
      %p60 = scmp.ne.s32.totalorder %s55, %s57
      %p61 = scmp.eq.s32.totalorder %s21, 0
      %p62 = por %p60, %p61
      %p63 = scmp.ne.s32.totalorder %s55, %s57
      %p64 = scmp.eq.s32.totalorder %s26, 1
      %p65 = por %p63, %p64
      %p66 = scmp.ne.s32.totalorder %s57, %s58
      %p67 = scmp.eq.s32.totalorder %s26, 0
      %p68 = por %p66, %p67
      %p69 = scmp.ne.s32.totalorder %s57, %s58
      %p70 = scmp.eq.s32.totalorder %s27, 1
      %p71 = por %p69, %p70
      %p73 = scmp.ne.s32.totalorder %s58, %s72
      %p74 = scmp.eq.s32.totalorder %s27, 0
      %p75 = por %p73, %p74
      %s77 = sadd.s32 %s76, 1
      %p80 = scmp.eq.s32.totalorder %s21, 1
      %p81 = scmp.ne.s32.totalorder %s76, %s78
      %p82 = scmp.eq.s32.totalorder %s21, 0
      %p83 = por %p81, %p82
      %p84 = scmp.ne.s32.totalorder %s76, %s78
      %p85 = scmp.eq.s32.totalorder %s26, 1
      %p86 = por %p84, %p85
      %p87 = scmp.ne.s32.totalorder %s78, %s79
      %p88 = scmp.eq.s32.totalorder %s26, 0
      %p89 = por %p87, %p88
      %p90 = scmp.ne.s32.totalorder %s78, %s79
      %p91 = scmp.eq.s32.totalorder %s27, 1
      %p92 = por %p90, %p91
      %p94 = scmp.ne.s32.totalorder %s79, %s93
      %p95 = scmp.eq.s32.totalorder %s27, 0
      %p96 = por %p94, %p95
      %s98 = sadd.s32 %s97, 1
      %p101 = scmp.eq.s32.totalorder %s21, 1
      %p102 = scmp.ne.s32.totalorder %s97, %s99
      %p103 = scmp.eq.s32.totalorder %s21, 0
      %p104 = por %p102, %p103
      %p105 = scmp.ne.s32.totalorder %s97, %s99
      %p106 = scmp.eq.s32.totalorder %s26, 1
      %p107 = por %p105, %p106
      %p108 = scmp.ne.s32.totalorder %s99, %s100
      %p109 = scmp.eq.s32.totalorder %s26, 0
      %p110 = por %p108, %p109
      %p111 = scmp.ne.s32.totalorder %s99, %s100
      %p112 = scmp.eq.s32.totalorder %s27, 1
      %p113 = por %p111, %p112
      %p115 = scmp.ne.s32.totalorder %s100, %s114
      %p116 = scmp.eq.s32.totalorder %s27, 0
      %p117 = por %p115, %p116
      %s119 = sadd.s32 %s118, 1
      %p122 = scmp.eq.s32.totalorder %s21, 1
      %p123 = scmp.ne.s32.totalorder %s118, %s120
      %p124 = scmp.eq.s32.totalorder %s21, 0
      %p125 = por %p123, %p124
      %p126 = scmp.ne.s32.totalorder %s118, %s120
      %p127 = scmp.eq.s32.totalorder %s26, 1
      %p128 = por %p126, %p127
      %p129 = scmp.ne.s32.totalorder %s120, %s121
      %p130 = scmp.eq.s32.totalorder %s26, 0
      %p131 = por %p129, %p130
      %p132 = scmp.ne.s32.totalorder %s120, %s121
      %p133 = scmp.eq.s32.totalorder %s27, 1
      %p134 = por %p132, %p133
      %p136 = scmp.ne.s32.totalorder %s121, %s135
      %p137 = scmp.eq.s32.totalorder %s27, 0
      %p138 = por %p136, %p137
      %s139 = ssub.s32 %s21, %s28
      %p140 = scmp.eq.s32.totalorder %s139, 0
      %s142 = sadd.s32 %s141, 1
      %s143 = scalar_select %p140, %s141, %s142
      %p146 = pneg %p140
      %p147 = scmp.eq.s32.totalorder %s21, 1
      %p148 = por %p146, %p147
      %p149 = scmp.ne.s32.totalorder %s141, %s144
      %p150 = scmp.eq.s32.totalorder %s21, 0
      %p151 = por %p149, %p150
      %p152 = scmp.ne.s32.totalorder %s141, %s144
      %p153 = scmp.eq.s32.totalorder %s26, 1
      %p154 = por %p152, %p153
      %p155 = scmp.ne.s32.totalorder %s144, %s145
      %p156 = scmp.eq.s32.totalorder %s26, 0
      %p157 = por %p155, %p156
      %p158 = scmp.ne.s32.totalorder %s144, %s145
      %p159 = scmp.eq.s32.totalorder %s27, 1
      %p160 = por %p158, %p159
      %p162 = scmp.ne.s32.totalorder %s145, %s161
      %p163 = scmp.eq.s32.totalorder %s27, 0
      %p164 = por %p162, %p163
      %s165 = ssub.s32 %s21, %s28
      %p166 = scmp.eq.s32.totalorder %s165, 0
      %s168 = sadd.s32 %s167, 1
      %s169 = scalar_select %p166, %s167, %s168
      %p172 = pneg %p166
      %p173 = scmp.eq.s32.totalorder %s21, 1
      %p174 = por %p172, %p173
      %p175 = scmp.ne.s32.totalorder %s167, %s170
      %p176 = scmp.eq.s32.totalorder %s21, 0
      %p177 = por %p175, %p176
      %p178 = scmp.ne.s32.totalorder %s167, %s170
      %p179 = scmp.eq.s32.totalorder %s26, 1
      %p180 = por %p178, %p179
      %p181 = scmp.ne.s32.totalorder %s170, %s171
      %p182 = scmp.eq.s32.totalorder %s26, 0
      %p183 = por %p181, %p182
      %p184 = scmp.ne.s32.totalorder %s170, %s171
      %p185 = scmp.eq.s32.totalorder %s27, 1
      %p186 = por %p184, %p185
      %p188 = scmp.ne.s32.totalorder %s171, %s187
      %p189 = scmp.eq.s32.totalorder %s27, 0
      %p190 = por %p188, %p189
      %p191 = scmp.le.s32.totalorder 1, %s21
      %p192 = scmp.lt.s32.totalorder %s21, 3
      %p193 = pnand %p191, %p192
      %p194 = pneg %p193
      // Predicated region
      $region9: #{tpu_custom_call.1} parent=5 // pred_check
        _
      $region10: #{tpu_custom_call.1} parent=5 // pred_check_branch
        %196 = sbr.rel (%p193) target = $region12
      $region11: #{tpu_custom_call.1} parent=5 // pred_region
        %s197 = ssub.s32 %s21, 1
        // Predicated region
        $region13: #{tpu_custom_call.1} parent=11 // pred_check
          %p198 = pneg %p68
        $region14: #{tpu_custom_call.1} parent=11 // pred_check_branch
          %200 = sbr.rel (%p198) target = $region16
        $region15: #{tpu_custom_call.1} parent=11 // pred_region
          %s202 = ssub.s32 24576, 24576
          %203 = vsyncadd [#allocation6], %s202
          %s204 = sshll.u32 [#allocation5], 4
          %s205 = int_to_ptr.vmem [resolvable:$true] %s204
          %210 = dma.hbm_to_vmem [thread:$0]  %s1, 24576, %s205, [#allocation6], 256, 256, 16
        $region16: #{tpu_custom_call.1} parent=11 // pred_fallthru
          _
        // Predicated region
        $region17: #{tpu_custom_call.1} parent=11 // pred_check
          %p211 = pneg %p89
        $region18: #{tpu_custom_call.1} parent=11 // pred_check_branch
          %213 = sbr.rel (%p211) target = $region20
        $region19: #{tpu_custom_call.1} parent=11 // pred_region
          %s215 = ssub.s32 64, 64
          %216 = vsyncadd [#allocation6], %s215
          %s218 = sshll.u32 [#allocation7], 4
          %s219 = int_to_ptr.vmem [resolvable:$true] %s218
          %221 = dma.hbm_to_vmem [thread:$0]  %s2, 64, %s219, [#allocation6]
        $region20: #{tpu_custom_call.1} parent=11 // pred_fallthru
          _
        // Predicated region
        $region21: #{tpu_custom_call.1} parent=11 // pred_check
          %p222 = pneg %p110
        $region22: #{tpu_custom_call.1} parent=11 // pred_check_branch
          %224 = sbr.rel (%p222) target = $region24
        $region23: #{tpu_custom_call.1} parent=11 // pred_region
          %s226 = ssub.s32 4096, 4096
          %227 = vsyncadd [#allocation9], %s226
          %s228 = sshll.u32 [#allocation8], 4
          %s229 = int_to_ptr.vmem [resolvable:$true] %s228
          %234 = dma.hbm_to_vmem [thread:$0]  %s3, 4096, %s229, [#allocation9], 64, 64, 4
        $region24: #{tpu_custom_call.1} parent=11 // pred_fallthru
          _
        // Predicated region
        $region25: #{tpu_custom_call.1} parent=11 // pred_check
          %p235 = pneg %p131
        $region26: #{tpu_custom_call.1} parent=11 // pred_check_branch
          %237 = sbr.rel (%p235) target = $region28
        $region27: #{tpu_custom_call.1} parent=11 // pred_region
          _
        $region28: #{tpu_custom_call.1} parent=11 // pred_fallthru
          _
      $region12: #{tpu_custom_call.1} parent=5 // pred_fallthru
        _
      %p238 = scmp.lt.s32.totalorder %s21, 2
      // Predicated region
      $region29: #{tpu_custom_call.1} parent=5 // pred_check
        %p239 = pneg %p238
      $region30: #{tpu_custom_call.1} parent=5 // pred_check_branch
        %241 = sbr.rel (%p239) target = $region32
      $region31: #{tpu_custom_call.1} parent=5 // pred_region
        // Predicated region
        $region33: #{tpu_custom_call.1} parent=31 // pred_check
          %p242 = pneg %p41
        $region34: #{tpu_custom_call.1} parent=31 // pred_check_branch
          %244 = sbr.rel (%p242) target = $region36
        $region35: #{tpu_custom_call.1} parent=31 // pred_region
          %s245 = sand.u32 %s31, 1
          %s246 = scalar_lea.sflag [#allocation3], %s245
          %s247 = sand.u32 %s31, 1
          %s248 = smul.addr %s247, 16
          %s249 = scalar_lea.vmem [#allocation2], %s248
          %s251 = ssub.s32 256, 256
          %252 = vsyncadd %s246, %s251
          %s253 = smul.addr %s21, 2
          %s254 = smul.addr %s253, 128
          %s255 = scalar_lea.hbm %s0, %s254
          %s257 = sshll.u32 %s249, 4
          %s258 = int_to_ptr.vmem [resolvable:$true] %s257
          %260 = dma.hbm_to_vmem [thread:$0]  %s255, 256, %s258, %s246
        $region36: #{tpu_custom_call.1} parent=31 // pred_fallthru
          _
      $region32: #{tpu_custom_call.1} parent=5 // pred_fallthru
        _
      %p261 = scmp.le.s32.totalorder 1, %s21
      %p262 = scmp.lt.s32.totalorder %s21, 3
      %p263 = pnand %p261, %p262
      %p264 = pneg %p263
      // Predicated region
      $region37: #{tpu_custom_call.1} parent=5 // pred_check
        _
      $region38: #{tpu_custom_call.1} parent=5 // pred_check_branch
        %266 = sbr.rel (%p263) target = $region40
      $region39: #{tpu_custom_call.1} parent=5 // pred_region
        %s267 = ssub.s32 %s21, 1
        %s268 = sand.u32 %s34, 1
        %s269 = scalar_lea.sflag [#allocation3], %s268
        %s270 = sand.u32 %s34, 1
        %s271 = smul.addr %s270, 16
        %s272 = scalar_lea.vmem [#allocation2], %s271
        // Predicated region
        $region41: #{tpu_custom_call.1} parent=39 // pred_check
          %p273 = pneg %p47
        $region42: #{tpu_custom_call.1} parent=39 // pred_check_branch
          %275 = sbr.rel (%p273) target = $region44
        $region43: #{tpu_custom_call.1} parent=39 // pred_region
          %276 = dma.done %s269, 256
        $region44: #{tpu_custom_call.1} parent=39 // pred_fallthru
          _
        // Predicated region
        $region45: #{tpu_custom_call.1} parent=39 // pred_check
          %p277 = pneg %p68
        $region46: #{tpu_custom_call.1} parent=39 // pred_check_branch
          %279 = sbr.rel (%p277) target = $region48
        $region47: #{tpu_custom_call.1} parent=39 // pred_region
          %280 = dma.done [#allocation6], 24576
        $region48: #{tpu_custom_call.1} parent=39 // pred_fallthru
          _
        // Predicated region
        $region49: #{tpu_custom_call.1} parent=39 // pred_check
          %p281 = pneg %p89
        $region50: #{tpu_custom_call.1} parent=39 // pred_check_branch
          %283 = sbr.rel (%p281) target = $region52
        $region51: #{tpu_custom_call.1} parent=39 // pred_region
          %284 = dma.done [#allocation6], 64
        $region52: #{tpu_custom_call.1} parent=39 // pred_fallthru
          _
        // Predicated region
        $region53: #{tpu_custom_call.1} parent=39 // pred_check
          %p285 = pneg %p110
        $region54: #{tpu_custom_call.1} parent=39 // pred_check_branch
          %287 = sbr.rel (%p285) target = $region56
        $region55: #{tpu_custom_call.1} parent=39 // pred_region
          %288 = dma.done [#allocation9], 4096
        $region56: #{tpu_custom_call.1} parent=39 // pred_fallthru
          _
        %s289 = sand.u32 %s34, 1
        %s290 = scalar_lea.sflag [#allocation3], %s289
        %s291 = sand.u32 %s34, 1
        %s292 = smul.addr %s291, 16
        %s293 = scalar_lea.vmem [#allocation2], %s292
        %p294 = pneg %p47
        %p295 = pneg %p44
        %p296 = pneg %p68
        %p297 = pneg %p65
        %p298 = pneg %p89
        %p299 = pneg %p86
        %p300 = pneg %p110
        %p301 = pneg %p107
        %p302 = pneg %p131
        %p303 = pneg %p128
        %p304 = pneg %p157
        %p305 = pneg %p154
        %s306 = sand.u32 %s144, 1
        %s307 = scalar_lea.sflag [#allocation4], %s306
        %s308 = sand.u32 %s144, 1
        %s309 = smul.addr %s308, 4
        %s310 = scalar_lea.vmem [#allocation10], %s309
        %p311 = pneg %p183
        %p312 = pneg %p180
        %p313 = scmp.lt.s32.totalorder %s26, 1
        %s314 = scalar_select %p313, %s26, 1
        %s315 = smul.addr %s314, 8
        %s316 = scalar_lea.vmem %s6, %s315
        %p317 = scmp.lt.s32.totalorder %s26, 1
        %s318 = scalar_select %p317, %s26, 1
        %s319 = smul.addr %s318, 8
        %s320 = scalar_lea.vmem %s6, %s319
        %v322 = vld [vmem:[%s272] sm:$0xff]
        %v323 = vld [vmem:[%s272 + $0x8] sm:$0xff]
        %v324 = vrot.slane %v322, 7
        %v325 = vrot.slane %v323, 7
        %v326 = vlaneseq
        %v327 = vshrl.u32 %v326, 7
        %vm328 = vcmp.ge.s32.totalorder %v327, 1
        %v329 = vsel %vm328, %v324, 0.0
        %v330 = vsel %vm328, %v325, 0.0
        %v331 = vrot.slane %v322, 1
        %v332 = vrot.slane %v323, 1
        %vm333 = vcmp.lt.s32.totalorder %v327, 7
        %v334 = vsel %vm333, %v331, 0.0
        %v335 = vsel %vm333, %v332, 0.0
        %v336 = vpack.c.bf16 %v329, %v329
        %v337 = vpack.c.bf16 %v330, %v330
        %v338 = vld [vmem:[#allocation5] sm:$0xff]
        %v339 = vld [vmem:[#allocation5 + $0x8] sm:$0xff]
        %v340 = vld [vmem:[#allocation5 + $0x10] sm:$0xff]
        %v341 = vld [vmem:[#allocation5 + $0x18] sm:$0xff]
        %v342 = vld [vmem:[#allocation5 + $0x20] sm:$0xff]
        %v343 = vld [vmem:[#allocation5 + $0x28] sm:$0xff]
        %v344 = vld [vmem:[#allocation5 + $0x30] sm:$0xff]
        %v345 = vld [vmem:[#allocation5 + $0x38] sm:$0xff]
        %v346 = vld [vmem:[#allocation5 + $0x40] sm:$0xff]
        %v347 = vld [vmem:[#allocation5 + $0x48] sm:$0xff]
        %v348 = vld [vmem:[#allocation5 + $0x50] sm:$0xff]
        %v349 = vld [vmem:[#allocation5 + $0x58] sm:$0xff]
        %v350 = vld [vmem:[#allocation5 + $0x60] sm:$0xff]
        %v351 = vld [vmem:[#allocation5 + $0x68] sm:$0xff]
        %v352 = vld [vmem:[#allocation5 + $0x70] sm:$0xff]
        %v353 = vld [vmem:[#allocation5 + $0x78] sm:$0xff]
        %v354 = vld [vmem:[#allocation5 + $0x80] sm:$0xff]
        %v355 = vld [vmem:[#allocation5 + $0x88] sm:$0xff]
        %v356 = vld [vmem:[#allocation5 + $0x90] sm:$0xff]
        %v357 = vld [vmem:[#allocation5 + $0x98] sm:$0xff]
        %v358 = vld [vmem:[#allocation5 + $0xa0] sm:$0xff]
        %v359 = vld [vmem:[#allocation5 + $0xa8] sm:$0xff]
        %v360 = vld [vmem:[#allocation5 + $0xb0] sm:$0xff]
        %v361 = vld [vmem:[#allocation5 + $0xb8] sm:$0xff]
        %v362 = vld [vmem:[#allocation5 + $0xc0] sm:$0xff]
        %v363 = vld [vmem:[#allocation5 + $0xc8] sm:$0xff]
        %v364 = vld [vmem:[#allocation5 + $0xd0] sm:$0xff]
        %v365 = vld [vmem:[#allocation5 + $0xd8] sm:$0xff]
        %v366 = vld [vmem:[#allocation5 + $0xe0] sm:$0xff]
        %v367 = vld [vmem:[#allocation5 + $0xe8] sm:$0xff]
        %v368 = vld [vmem:[#allocation5 + $0xf0] sm:$0xff]
        %v369 = vld [vmem:[#allocation5 + $0xf8] sm:$0xff]
        %v370 = vld [vmem:[#allocation5 + $0x100] sm:$0xff]
        %v371 = vld [vmem:[#allocation5 + $0x108] sm:$0xff]
        %v372 = vld [vmem:[#allocation5 + $0x110] sm:$0xff]
        %v373 = vld [vmem:[#allocation5 + $0x118] sm:$0xff]
        %v374 = vld [vmem:[#allocation5 + $0x120] sm:$0xff]
        %v375 = vld [vmem:[#allocation5 + $0x128] sm:$0xff]
        %v376 = vld [vmem:[#allocation5 + $0x130] sm:$0xff]
        %v377 = vld [vmem:[#allocation5 + $0x138] sm:$0xff]
        %v378 = vld [vmem:[#allocation5 + $0x140] sm:$0xff]
        %v379 = vld [vmem:[#allocation5 + $0x148] sm:$0xff]
        %v380 = vld [vmem:[#allocation5 + $0x150] sm:$0xff]
        %v381 = vld [vmem:[#allocation5 + $0x158] sm:$0xff]
        %v382 = vld [vmem:[#allocation5 + $0x160] sm:$0xff]
        %v383 = vld [vmem:[#allocation5 + $0x168] sm:$0xff]
        %v384 = vld [vmem:[#allocation5 + $0x170] sm:$0xff]
        %v385 = vld [vmem:[#allocation5 + $0x178] sm:$0xff]
        %v386 = vld [vmem:[#allocation5 + $0x180] sm:$0xff]
        %v387 = vld [vmem:[#allocation5 + $0x188] sm:$0xff]
        %v388 = vld [vmem:[#allocation5 + $0x190] sm:$0xff]
        %v389 = vld [vmem:[#allocation5 + $0x198] sm:$0xff]
        %v390 = vld [vmem:[#allocation5 + $0x1a0] sm:$0xff]
        %v391 = vld [vmem:[#allocation5 + $0x1a8] sm:$0xff]
        %v392 = vld [vmem:[#allocation5 + $0x1b0] sm:$0xff]
        %v393 = vld [vmem:[#allocation5 + $0x1b8] sm:$0xff]
        %v394 = vld [vmem:[#allocation5 + $0x1c0] sm:$0xff]
        %v395 = vld [vmem:[#allocation5 + $0x1c8] sm:$0xff]
        %v396 = vld [vmem:[#allocation5 + $0x1d0] sm:$0xff]
        %v397 = vld [vmem:[#allocation5 + $0x1d8] sm:$0xff]
        %v398 = vld [vmem:[#allocation5 + $0x1e0] sm:$0xff]
        %v399 = vld [vmem:[#allocation5 + $0x1e8] sm:$0xff]
        %v400 = vld [vmem:[#allocation5 + $0x1f0] sm:$0xff]
        %v401 = vld [vmem:[#allocation5 + $0x1f8] sm:$0xff]
        %v402 = vpack.c.bf16 %v322, %v322
        %v403 = vpack.c.bf16 %v323, %v323
        %s404 = scalar_lea.vmem [#allocation5], 512
        %v405 = vld [vmem:[%s404] sm:$0xff]
        %v406 = vld [vmem:[%s404 + $0x8] sm:$0xff]
        %v407 = vld [vmem:[%s404 + $0x10] sm:$0xff]
        %v408 = vld [vmem:[%s404 + $0x18] sm:$0xff]
        %v409 = vld [vmem:[%s404 + $0x20] sm:$0xff]
        %v410 = vld [vmem:[%s404 + $0x28] sm:$0xff]
        %v411 = vld [vmem:[%s404 + $0x30] sm:$0xff]
        %v412 = vld [vmem:[%s404 + $0x38] sm:$0xff]
        %v413 = vld [vmem:[%s404 + $0x40] sm:$0xff]
        %v414 = vld [vmem:[%s404 + $0x48] sm:$0xff]
        %v415 = vld [vmem:[%s404 + $0x50] sm:$0xff]
        %v416 = vld [vmem:[%s404 + $0x58] sm:$0xff]
        %v417 = vld [vmem:[%s404 + $0x60] sm:$0xff]
        %v418 = vld [vmem:[%s404 + $0x68] sm:$0xff]
        %v419 = vld [vmem:[%s404 + $0x70] sm:$0xff]
        %v420 = vld [vmem:[%s404 + $0x78] sm:$0xff]
        %v421 = vld [vmem:[%s404 + $0x80] sm:$0xff]
        %v422 = vld [vmem:[%s404 + $0x88] sm:$0xff]
        %v423 = vld [vmem:[%s404 + $0x90] sm:$0xff]
        %v424 = vld [vmem:[%s404 + $0x98] sm:$0xff]
        %v425 = vld [vmem:[%s404 + $0xa0] sm:$0xff]
        %v426 = vld [vmem:[%s404 + $0xa8] sm:$0xff]
        %v427 = vld [vmem:[%s404 + $0xb0] sm:$0xff]
        %v428 = vld [vmem:[%s404 + $0xb8] sm:$0xff]
        %v429 = vld [vmem:[%s404 + $0xc0] sm:$0xff]
        %v430 = vld [vmem:[%s404 + $0xc8] sm:$0xff]
        %v431 = vld [vmem:[%s404 + $0xd0] sm:$0xff]
        %v432 = vld [vmem:[%s404 + $0xd8] sm:$0xff]
        %v433 = vld [vmem:[%s404 + $0xe0] sm:$0xff]
        %v434 = vld [vmem:[%s404 + $0xe8] sm:$0xff]
        %v435 = vld [vmem:[%s404 + $0xf0] sm:$0xff]
        %v436 = vld [vmem:[%s404 + $0xf8] sm:$0xff]
        %v437 = vld [vmem:[%s404 + $0x100] sm:$0xff]
        %v438 = vld [vmem:[%s404 + $0x108] sm:$0xff]
        %v439 = vld [vmem:[%s404 + $0x110] sm:$0xff]
        %v440 = vld [vmem:[%s404 + $0x118] sm:$0xff]
        %v441 = vld [vmem:[%s404 + $0x120] sm:$0xff]
        %v442 = vld [vmem:[%s404 + $0x128] sm:$0xff]
        %v443 = vld [vmem:[%s404 + $0x130] sm:$0xff]
        %v444 = vld [vmem:[%s404 + $0x138] sm:$0xff]
        %v445 = vld [vmem:[%s404 + $0x140] sm:$0xff]
        %v446 = vld [vmem:[%s404 + $0x148] sm:$0xff]
        %v447 = vld [vmem:[%s404 + $0x150] sm:$0xff]
        %v448 = vld [vmem:[%s404 + $0x158] sm:$0xff]
        %v449 = vld [vmem:[%s404 + $0x160] sm:$0xff]
        %v450 = vld [vmem:[%s404 + $0x168] sm:$0xff]
        %v451 = vld [vmem:[%s404 + $0x170] sm:$0xff]
        %v452 = vld [vmem:[%s404 + $0x178] sm:$0xff]
        %v453 = vld [vmem:[%s404 + $0x180] sm:$0xff]
        %v454 = vld [vmem:[%s404 + $0x188] sm:$0xff]
        %v455 = vld [vmem:[%s404 + $0x190] sm:$0xff]
        %v456 = vld [vmem:[%s404 + $0x198] sm:$0xff]
        %v457 = vld [vmem:[%s404 + $0x1a0] sm:$0xff]
        %v458 = vld [vmem:[%s404 + $0x1a8] sm:$0xff]
        %v459 = vld [vmem:[%s404 + $0x1b0] sm:$0xff]
        %v460 = vld [vmem:[%s404 + $0x1b8] sm:$0xff]
        %v461 = vld [vmem:[%s404 + $0x1c0] sm:$0xff]
        %v462 = vld [vmem:[%s404 + $0x1c8] sm:$0xff]
        %v463 = vld [vmem:[%s404 + $0x1d0] sm:$0xff]
        %v464 = vld [vmem:[%s404 + $0x1d8] sm:$0xff]
        %v465 = vld [vmem:[%s404 + $0x1e0] sm:$0xff]
        %v466 = vld [vmem:[%s404 + $0x1e8] sm:$0xff]
        %v467 = vld [vmem:[%s404 + $0x1f0] sm:$0xff]
        %v468 = vld [vmem:[%s404 + $0x1f8] sm:$0xff]
        %v533 = vunpack.c.l.b16 %v405
        %v534 = vunpack.c.h.b16 %v405
        %v535 = vunpack.c.l.b16 %v406
        %v536 = vunpack.c.h.b16 %v406
        %v537 = vunpack.c.l.b16 %v407
        %v538 = vunpack.c.h.b16 %v407
        %v539 = vunpack.c.l.b16 %v408
        %v540 = vunpack.c.h.b16 %v408
        %v541 = vunpack.c.l.b16 %v409
        %v542 = vunpack.c.h.b16 %v409
        %v543 = vunpack.c.l.b16 %v410
        %v544 = vunpack.c.h.b16 %v410
        %v545 = vunpack.c.l.b16 %v411
        %v546 = vunpack.c.h.b16 %v411
        %v547 = vunpack.c.l.b16 %v412
        %v548 = vunpack.c.h.b16 %v412
        %v549 = vunpack.c.l.b16 %v413
        %v550 = vunpack.c.h.b16 %v413
        %v551 = vunpack.c.l.b16 %v414
        %v552 = vunpack.c.h.b16 %v414
        %v553 = vunpack.c.l.b16 %v415
        %v554 = vunpack.c.h.b16 %v415
        %v555 = vunpack.c.l.b16 %v416
        %v556 = vunpack.c.h.b16 %v416
        %v557 = vunpack.c.l.b16 %v417
        %v558 = vunpack.c.h.b16 %v417
        %v559 = vunpack.c.l.b16 %v418
        %v560 = vunpack.c.h.b16 %v418
        %v561 = vunpack.c.l.b16 %v419
        %v562 = vunpack.c.h.b16 %v419
        %v563 = vunpack.c.l.b16 %v420
        %v564 = vunpack.c.h.b16 %v420
        %v565 = vunpack.c.l.b16 %v421
        %v566 = vunpack.c.h.b16 %v421
        %v567 = vunpack.c.l.b16 %v422
        %v568 = vunpack.c.h.b16 %v422
        %v569 = vunpack.c.l.b16 %v423
        %v570 = vunpack.c.h.b16 %v423
        %v571 = vunpack.c.l.b16 %v424
        %v572 = vunpack.c.h.b16 %v424
        %v573 = vunpack.c.l.b16 %v425
        %v574 = vunpack.c.h.b16 %v425
        %v575 = vunpack.c.l.b16 %v426
        %v576 = vunpack.c.h.b16 %v426
        %v577 = vunpack.c.l.b16 %v427
        %v578 = vunpack.c.h.b16 %v427
        %v579 = vunpack.c.l.b16 %v428
        %v580 = vunpack.c.h.b16 %v428
        %v581 = vunpack.c.l.b16 %v429
        %v582 = vunpack.c.h.b16 %v429
        %v583 = vunpack.c.l.b16 %v430
        %v584 = vunpack.c.h.b16 %v430
        %v585 = vunpack.c.l.b16 %v431
        %v586 = vunpack.c.h.b16 %v431
        %v587 = vunpack.c.l.b16 %v432
        %v588 = vunpack.c.h.b16 %v432
        %v589 = vunpack.c.l.b16 %v433
        %v590 = vunpack.c.h.b16 %v433
        %v591 = vunpack.c.l.b16 %v434
        %v592 = vunpack.c.h.b16 %v434
        %v593 = vunpack.c.l.b16 %v435
        %v594 = vunpack.c.h.b16 %v435
        %v595 = vunpack.c.l.b16 %v436
        %v596 = vunpack.c.h.b16 %v436
        %v597 = vunpack.c.l.b16 %v437
        %v598 = vunpack.c.h.b16 %v437
        %v599 = vunpack.c.l.b16 %v438
        %v600 = vunpack.c.h.b16 %v438
        %v601 = vunpack.c.l.b16 %v439
        %v602 = vunpack.c.h.b16 %v439
        %v603 = vunpack.c.l.b16 %v440
        %v604 = vunpack.c.h.b16 %v440
        %v605 = vunpack.c.l.b16 %v441
        %v606 = vunpack.c.h.b16 %v441
        %v607 = vunpack.c.l.b16 %v442
        %v608 = vunpack.c.h.b16 %v442
        %v609 = vunpack.c.l.b16 %v443
        %v610 = vunpack.c.h.b16 %v443
        %v611 = vunpack.c.l.b16 %v444
        %v612 = vunpack.c.h.b16 %v444
        %v613 = vunpack.c.l.b16 %v445
        %v614 = vunpack.c.h.b16 %v445
        %v615 = vunpack.c.l.b16 %v446
        %v616 = vunpack.c.h.b16 %v446
        %v617 = vunpack.c.l.b16 %v447
        %v618 = vunpack.c.h.b16 %v447
        %v619 = vunpack.c.l.b16 %v448
        %v620 = vunpack.c.h.b16 %v448
        %v621 = vunpack.c.l.b16 %v449
        %v622 = vunpack.c.h.b16 %v449
        %v623 = vunpack.c.l.b16 %v450
        %v624 = vunpack.c.h.b16 %v450
        %v625 = vunpack.c.l.b16 %v451
        %v626 = vunpack.c.h.b16 %v451
        %v627 = vunpack.c.l.b16 %v452
        %v628 = vunpack.c.h.b16 %v452
        %v629 = vunpack.c.l.b16 %v453
        %v630 = vunpack.c.h.b16 %v453
        %v631 = vunpack.c.l.b16 %v454
        %v632 = vunpack.c.h.b16 %v454
        %v633 = vunpack.c.l.b16 %v455
        %v634 = vunpack.c.h.b16 %v455
        %v635 = vunpack.c.l.b16 %v456
        %v636 = vunpack.c.h.b16 %v456
        %v637 = vunpack.c.l.b16 %v457
        %v638 = vunpack.c.h.b16 %v457
        %v639 = vunpack.c.l.b16 %v458
        %v640 = vunpack.c.h.b16 %v458
        %v641 = vunpack.c.l.b16 %v459
        %v642 = vunpack.c.h.b16 %v459
        %v643 = vunpack.c.l.b16 %v460
        %v644 = vunpack.c.h.b16 %v460
        %v645 = vunpack.c.l.b16 %v461
        %v646 = vunpack.c.h.b16 %v461
        %v647 = vunpack.c.l.b16 %v462
        %v648 = vunpack.c.h.b16 %v462
        %v649 = vunpack.c.l.b16 %v463
        %v650 = vunpack.c.h.b16 %v463
        %v651 = vunpack.c.l.b16 %v464
        %v652 = vunpack.c.h.b16 %v464
        %v653 = vunpack.c.l.b16 %v465
        %v654 = vunpack.c.h.b16 %v465
        %v655 = vunpack.c.l.b16 %v466
        %v656 = vunpack.c.h.b16 %v466
        %v657 = vunpack.c.l.b16 %v467
        %v658 = vunpack.c.h.b16 %v467
        %v659 = vunpack.c.l.b16 %v468
        %v660 = vunpack.c.h.b16 %v468
        %v661 = vpack.c.b16 %v537, %v533
        %v662 = vpack.c.b16 %v538, %v534
        %v663 = vpack.c.b16 %v539, %v535
        %v664 = vpack.c.b16 %v540, %v536
        %v665 = vpack.c.b16 %v545, %v541
        %v666 = vpack.c.b16 %v546, %v542
        %v667 = vpack.c.b16 %v547, %v543
        %v668 = vpack.c.b16 %v548, %v544
        %v669 = vpack.c.b16 %v553, %v549
        %v670 = vpack.c.b16 %v554, %v550
        %v671 = vpack.c.b16 %v555, %v551
        %v672 = vpack.c.b16 %v556, %v552
        %v673 = vpack.c.b16 %v561, %v557
        %v674 = vpack.c.b16 %v562, %v558
        %v675 = vpack.c.b16 %v563, %v559
        %v676 = vpack.c.b16 %v564, %v560
        %v677 = vpack.c.b16 %v569, %v565
        %v678 = vpack.c.b16 %v570, %v566
        %v679 = vpack.c.b16 %v571, %v567
        %v680 = vpack.c.b16 %v572, %v568
        %v681 = vpack.c.b16 %v577, %v573
        %v682 = vpack.c.b16 %v578, %v574
        %v683 = vpack.c.b16 %v579, %v575
        %v684 = vpack.c.b16 %v580, %v576
        %v685 = vpack.c.b16 %v585, %v581
        %v686 = vpack.c.b16 %v586, %v582
        %v687 = vpack.c.b16 %v587, %v583
        %v688 = vpack.c.b16 %v588, %v584
        %v689 = vpack.c.b16 %v593, %v589
        %v690 = vpack.c.b16 %v594, %v590
        %v691 = vpack.c.b16 %v595, %v591
        %v692 = vpack.c.b16 %v596, %v592
        %v693 = vpack.c.b16 %v601, %v597
        %v694 = vpack.c.b16 %v602, %v598
        %v695 = vpack.c.b16 %v603, %v599
        %v696 = vpack.c.b16 %v604, %v600
        %v697 = vpack.c.b16 %v609, %v605
        %v698 = vpack.c.b16 %v610, %v606
        %v699 = vpack.c.b16 %v611, %v607
        %v700 = vpack.c.b16 %v612, %v608
        %v701 = vpack.c.b16 %v617, %v613
        %v702 = vpack.c.b16 %v618, %v614
        %v703 = vpack.c.b16 %v619, %v615
        %v704 = vpack.c.b16 %v620, %v616
        %v705 = vpack.c.b16 %v625, %v621
        %v706 = vpack.c.b16 %v626, %v622
        %v707 = vpack.c.b16 %v627, %v623
        %v708 = vpack.c.b16 %v628, %v624
        %v709 = vpack.c.b16 %v633, %v629
        %v710 = vpack.c.b16 %v634, %v630
        %v711 = vpack.c.b16 %v635, %v631
        %v712 = vpack.c.b16 %v636, %v632
        %v713 = vpack.c.b16 %v641, %v637
        %v714 = vpack.c.b16 %v642, %v638
        %v715 = vpack.c.b16 %v643, %v639
        %v716 = vpack.c.b16 %v644, %v640
        %v717 = vpack.c.b16 %v649, %v645
        %v718 = vpack.c.b16 %v650, %v646
        %v719 = vpack.c.b16 %v651, %v647
        %v720 = vpack.c.b16 %v652, %v648
        %v721 = vpack.c.b16 %v657, %v653
        %v722 = vpack.c.b16 %v658, %v654
        %v723 = vpack.c.b16 %v659, %v655
        %v724 = vpack.c.b16 %v660, %v656
        %789 = vmatprep.subr.bf16.mxu0 %v690
        %790 = vmatpush1.bf16.msra.mxu0 %v689
        %791 = vmatprep.subr.bf16.mxu0 %v686
        %792 = vmatpush1.bf16.msra.mxu0 %v685
        %793 = vmatprep.subr.bf16.mxu0 %v682
        %794 = vmatpush1.bf16.msra.mxu0 %v681
        %795 = vmatprep.subr.bf16.mxu0 %v678
        %796 = vmatpush1.bf16.msra.mxu0 %v677
        %797 = vmatprep.subr.bf16.mxu0 %v674
        %798 = vmatpush1.bf16.msra.mxu0 %v673
        %799 = vmatprep.subr.bf16.mxu0 %v670
        %800 = vmatpush1.bf16.msra.mxu0 %v669
        %801 = vmatprep.subr.bf16.mxu0 %v666
        %802 = vmatpush1.bf16.msra.mxu0 %v665
        %803 = vmatprep.subr.bf16.mxu0 %v662
        %804 = vmatpush1.bf16.msra.mxu0 %v661
        %805 = vmatprep.subr.bf16.mxu0 %v722
        %806 = vmatpush2.bf16.msra.mxu0 %v721
        %807 = vmatprep.subr.bf16.mxu0 %v718
        %808 = vmatpush2.bf16.msra.mxu0 %v717
        %809 = vmatprep.subr.bf16.mxu0 %v714
        %810 = vmatpush2.bf16.msra.mxu0 %v713
        %811 = vmatprep.subr.bf16.mxu0 %v710
        %812 = vmatpush2.bf16.msra.mxu0 %v709
        %813 = vmatprep.subr.bf16.mxu0 %v706
        %814 = vmatpush2.bf16.msra.mxu0 %v705
        %815 = vmatprep.subr.bf16.mxu0 %v702
        %816 = vmatpush2.bf16.msra.mxu0 %v701
        %817 = vmatprep.subr.bf16.mxu0 %v698
        %818 = vmatpush2.bf16.msra.mxu0 %v697
        %819 = vmatprep.subr.bf16.mxu0 %v694
        %820 = vmatpush2.bf16.msra.mxu0 %v693
        %821 = vmatprep.mubr.bf16.mxu0 %v403
        %822 = vmatmul.mubr.bf16.gmra.mxu0 %v402
        %v823 = vpop.f32.mrf.mxu0
        %v824 = vadd.f32 0.0, %v823
        %v825 = vpop.f32.mrf.mxu0
        %v826 = vadd.f32 0.0, %v825
        %v827 = vpop.f32.mrf.mxu0
        %v828 = vpop.f32.mrf.mxu0
        %829 = vdwg.mxu0
        %830 = vmatprep.subr.bf16.mxu0 %v692
        %831 = vmatpush1.bf16.msra.mxu0 %v691
        %832 = vmatprep.subr.bf16.mxu0 %v688
        %833 = vmatpush1.bf16.msra.mxu0 %v687
        %834 = vmatprep.subr.bf16.mxu0 %v684
        %835 = vmatpush1.bf16.msra.mxu0 %v683
        %836 = vmatprep.subr.bf16.mxu0 %v680
        %837 = vmatpush1.bf16.msra.mxu0 %v679
        %838 = vmatprep.subr.bf16.mxu0 %v676
        %839 = vmatpush1.bf16.msra.mxu0 %v675
        %840 = vmatprep.subr.bf16.mxu0 %v672
        %841 = vmatpush1.bf16.msra.mxu0 %v671
        %842 = vmatprep.subr.bf16.mxu0 %v668
        %843 = vmatpush1.bf16.msra.mxu0 %v667
        %844 = vmatprep.subr.bf16.mxu0 %v664
        %845 = vmatpush1.bf16.msra.mxu0 %v663
        %846 = vmatprep.subr.bf16.mxu0 %v724
        %847 = vmatpush2.bf16.msra.mxu0 %v723
        %848 = vmatprep.subr.bf16.mxu0 %v720
        %849 = vmatpush2.bf16.msra.mxu0 %v719
        %850 = vmatprep.subr.bf16.mxu0 %v716
        %851 = vmatpush2.bf16.msra.mxu0 %v715
        %852 = vmatprep.subr.bf16.mxu0 %v712
        %853 = vmatpush2.bf16.msra.mxu0 %v711
        %854 = vmatprep.subr.bf16.mxu0 %v708
        %855 = vmatpush2.bf16.msra.mxu0 %v707
        %856 = vmatprep.subr.bf16.mxu0 %v704
        %857 = vmatpush2.bf16.msra.mxu0 %v703
        %858 = vmatprep.subr.bf16.mxu0 %v700
        %859 = vmatpush2.bf16.msra.mxu0 %v699
        %860 = vmatprep.subr.bf16.mxu0 %v696
        %861 = vmatpush2.bf16.msra.mxu0 %v695
        %862 = vmatprep.mubr.bf16.mxu0 %v403
        %863 = vmatmul.mubr.bf16.gmra.mxu0 %v402
        %v864 = vpop.f32.mrf.mxu0
        %v865 = vadd.f32 0.0, %v864
        %v866 = vpop.f32.mrf.mxu0
        %v867 = vadd.f32 0.0, %v866
        %v868 = vpop.f32.mrf.mxu0
        %v869 = vpop.f32.mrf.mxu0
        %870 = vdwg.mxu0
        %v935 = vunpack.c.l.b16 %v338
        %v936 = vunpack.c.h.b16 %v338
        %v937 = vunpack.c.l.b16 %v339
        %v938 = vunpack.c.h.b16 %v339
        %v939 = vunpack.c.l.b16 %v340
        %v940 = vunpack.c.h.b16 %v340
        %v941 = vunpack.c.l.b16 %v341
        %v942 = vunpack.c.h.b16 %v341
        %v943 = vunpack.c.l.b16 %v342
        %v944 = vunpack.c.h.b16 %v342
        %v945 = vunpack.c.l.b16 %v343
        %v946 = vunpack.c.h.b16 %v343
        %v947 = vunpack.c.l.b16 %v344
        %v948 = vunpack.c.h.b16 %v344
        %v949 = vunpack.c.l.b16 %v345
        %v950 = vunpack.c.h.b16 %v345
        %v951 = vunpack.c.l.b16 %v346
        %v952 = vunpack.c.h.b16 %v346
        %v953 = vunpack.c.l.b16 %v347
        %v954 = vunpack.c.h.b16 %v347
        %v955 = vunpack.c.l.b16 %v348
        %v956 = vunpack.c.h.b16 %v348
        %v957 = vunpack.c.l.b16 %v349
        %v958 = vunpack.c.h.b16 %v349
        %v959 = vunpack.c.l.b16 %v350
        %v960 = vunpack.c.h.b16 %v350
        %v961 = vunpack.c.l.b16 %v351
        %v962 = vunpack.c.h.b16 %v351
        %v963 = vunpack.c.l.b16 %v352
        %v964 = vunpack.c.h.b16 %v352
        %v965 = vunpack.c.l.b16 %v353
        %v966 = vunpack.c.h.b16 %v353
        %v967 = vunpack.c.l.b16 %v354
        %v968 = vunpack.c.h.b16 %v354
        %v969 = vunpack.c.l.b16 %v355
        %v970 = vunpack.c.h.b16 %v355
        %v971 = vunpack.c.l.b16 %v356
        %v972 = vunpack.c.h.b16 %v356
        %v973 = vunpack.c.l.b16 %v357
        %v974 = vunpack.c.h.b16 %v357
        %v975 = vunpack.c.l.b16 %v358
        %v976 = vunpack.c.h.b16 %v358
        %v977 = vunpack.c.l.b16 %v359
        %v978 = vunpack.c.h.b16 %v359
        %v979 = vunpack.c.l.b16 %v360
        %v980 = vunpack.c.h.b16 %v360
        %v981 = vunpack.c.l.b16 %v361
        %v982 = vunpack.c.h.b16 %v361
        %v983 = vunpack.c.l.b16 %v362
        %v984 = vunpack.c.h.b16 %v362
        %v985 = vunpack.c.l.b16 %v363
        %v986 = vunpack.c.h.b16 %v363
        %v987 = vunpack.c.l.b16 %v364
        %v988 = vunpack.c.h.b16 %v364
        %v989 = vunpack.c.l.b16 %v365
        %v990 = vunpack.c.h.b16 %v365
        %v991 = vunpack.c.l.b16 %v366
        %v992 = vunpack.c.h.b16 %v366
        %v993 = vunpack.c.l.b16 %v367
        %v994 = vunpack.c.h.b16 %v367
        %v995 = vunpack.c.l.b16 %v368
        %v996 = vunpack.c.h.b16 %v368
        %v997 = vunpack.c.l.b16 %v369
        %v998 = vunpack.c.h.b16 %v369
        %v999 = vunpack.c.l.b16 %v370
        %v1000 = vunpack.c.h.b16 %v370
        %v1001 = vunpack.c.l.b16 %v371
        %v1002 = vunpack.c.h.b16 %v371
        %v1003 = vunpack.c.l.b16 %v372
        %v1004 = vunpack.c.h.b16 %v372
        %v1005 = vunpack.c.l.b16 %v373
        %v1006 = vunpack.c.h.b16 %v373
        %v1007 = vunpack.c.l.b16 %v374
        %v1008 = vunpack.c.h.b16 %v374
        %v1009 = vunpack.c.l.b16 %v375
        %v1010 = vunpack.c.h.b16 %v375
        %v1011 = vunpack.c.l.b16 %v376
        %v1012 = vunpack.c.h.b16 %v376
        %v1013 = vunpack.c.l.b16 %v377
        %v1014 = vunpack.c.h.b16 %v377
        %v1015 = vunpack.c.l.b16 %v378
        %v1016 = vunpack.c.h.b16 %v378
        %v1017 = vunpack.c.l.b16 %v379
        %v1018 = vunpack.c.h.b16 %v379
        %v1019 = vunpack.c.l.b16 %v380
        %v1020 = vunpack.c.h.b16 %v380
        %v1021 = vunpack.c.l.b16 %v381
        %v1022 = vunpack.c.h.b16 %v381
        %v1023 = vunpack.c.l.b16 %v382
        %v1024 = vunpack.c.h.b16 %v382
        %v1025 = vunpack.c.l.b16 %v383
        %v1026 = vunpack.c.h.b16 %v383
        %v1027 = vunpack.c.l.b16 %v384
        %v1028 = vunpack.c.h.b16 %v384
        %v1029 = vunpack.c.l.b16 %v385
        %v1030 = vunpack.c.h.b16 %v385
        %v1031 = vunpack.c.l.b16 %v386
        %v1032 = vunpack.c.h.b16 %v386
        %v1033 = vunpack.c.l.b16 %v387
        %v1034 = vunpack.c.h.b16 %v387
        %v1035 = vunpack.c.l.b16 %v388
        %v1036 = vunpack.c.h.b16 %v388
        %v1037 = vunpack.c.l.b16 %v389
        %v1038 = vunpack.c.h.b16 %v389
        %v1039 = vunpack.c.l.b16 %v390
        %v1040 = vunpack.c.h.b16 %v390
        %v1041 = vunpack.c.l.b16 %v391
        %v1042 = vunpack.c.h.b16 %v391
        %v1043 = vunpack.c.l.b16 %v392
        %v1044 = vunpack.c.h.b16 %v392
        %v1045 = vunpack.c.l.b16 %v393
        %v1046 = vunpack.c.h.b16 %v393
        %v1047 = vunpack.c.l.b16 %v394
        %v1048 = vunpack.c.h.b16 %v394
        %v1049 = vunpack.c.l.b16 %v395
        %v1050 = vunpack.c.h.b16 %v395
        %v1051 = vunpack.c.l.b16 %v396
        %v1052 = vunpack.c.h.b16 %v396
        %v1053 = vunpack.c.l.b16 %v397
        %v1054 = vunpack.c.h.b16 %v397
        %v1055 = vunpack.c.l.b16 %v398
        %v1056 = vunpack.c.h.b16 %v398
        %v1057 = vunpack.c.l.b16 %v399
        %v1058 = vunpack.c.h.b16 %v399
        %v1059 = vunpack.c.l.b16 %v400
        %v1060 = vunpack.c.h.b16 %v400
        %v1061 = vunpack.c.l.b16 %v401
        %v1062 = vunpack.c.h.b16 %v401
        %v1063 = vpack.c.b16 %v939, %v935
        %v1064 = vpack.c.b16 %v940, %v936
        %v1065 = vpack.c.b16 %v941, %v937
        %v1066 = vpack.c.b16 %v942, %v938
        %v1067 = vpack.c.b16 %v947, %v943
        %v1068 = vpack.c.b16 %v948, %v944
        %v1069 = vpack.c.b16 %v949, %v945
        %v1070 = vpack.c.b16 %v950, %v946
        %v1071 = vpack.c.b16 %v955, %v951
        %v1072 = vpack.c.b16 %v956, %v952
        %v1073 = vpack.c.b16 %v957, %v953
        %v1074 = vpack.c.b16 %v958, %v954
        %v1075 = vpack.c.b16 %v963, %v959
        %v1076 = vpack.c.b16 %v964, %v960
        %v1077 = vpack.c.b16 %v965, %v961
        %v1078 = vpack.c.b16 %v966, %v962
        %v1079 = vpack.c.b16 %v971, %v967
        %v1080 = vpack.c.b16 %v972, %v968
        %v1081 = vpack.c.b16 %v973, %v969
        %v1082 = vpack.c.b16 %v974, %v970
        %v1083 = vpack.c.b16 %v979, %v975
        %v1084 = vpack.c.b16 %v980, %v976
        %v1085 = vpack.c.b16 %v981, %v977
        %v1086 = vpack.c.b16 %v982, %v978
        %v1087 = vpack.c.b16 %v987, %v983
        %v1088 = vpack.c.b16 %v988, %v984
        %v1089 = vpack.c.b16 %v989, %v985
        %v1090 = vpack.c.b16 %v990, %v986
        %v1091 = vpack.c.b16 %v995, %v991
        %v1092 = vpack.c.b16 %v996, %v992
        %v1093 = vpack.c.b16 %v997, %v993
        %v1094 = vpack.c.b16 %v998, %v994
        %v1095 = vpack.c.b16 %v1003, %v999
        %v1096 = vpack.c.b16 %v1004, %v1000
        %v1097 = vpack.c.b16 %v1005, %v1001
        %v1098 = vpack.c.b16 %v1006, %v1002
        %v1099 = vpack.c.b16 %v1011, %v1007
        %v1100 = vpack.c.b16 %v1012, %v1008
        %v1101 = vpack.c.b16 %v1013, %v1009
        %v1102 = vpack.c.b16 %v1014, %v1010
        %v1103 = vpack.c.b16 %v1019, %v1015
        %v1104 = vpack.c.b16 %v1020, %v1016
        %v1105 = vpack.c.b16 %v1021, %v1017
        %v1106 = vpack.c.b16 %v1022, %v1018
        %v1107 = vpack.c.b16 %v1027, %v1023
        %v1108 = vpack.c.b16 %v1028, %v1024
        %v1109 = vpack.c.b16 %v1029, %v1025
        %v1110 = vpack.c.b16 %v1030, %v1026
        %v1111 = vpack.c.b16 %v1035, %v1031
        %v1112 = vpack.c.b16 %v1036, %v1032
        %v1113 = vpack.c.b16 %v1037, %v1033
        %v1114 = vpack.c.b16 %v1038, %v1034
        %v1115 = vpack.c.b16 %v1043, %v1039
        %v1116 = vpack.c.b16 %v1044, %v1040
        %v1117 = vpack.c.b16 %v1045, %v1041
        %v1118 = vpack.c.b16 %v1046, %v1042
        %v1119 = vpack.c.b16 %v1051, %v1047
        %v1120 = vpack.c.b16 %v1052, %v1048
        %v1121 = vpack.c.b16 %v1053, %v1049
        %v1122 = vpack.c.b16 %v1054, %v1050
        %v1123 = vpack.c.b16 %v1059, %v1055
        %v1124 = vpack.c.b16 %v1060, %v1056
        %v1125 = vpack.c.b16 %v1061, %v1057
        %v1126 = vpack.c.b16 %v1062, %v1058
        %1191 = vmatprep.subr.bf16.mxu0 %v1092
        %1192 = vmatpush1.bf16.msra.mxu0 %v1091
        %1193 = vmatprep.subr.bf16.mxu0 %v1088
        %1194 = vmatpush1.bf16.msra.mxu0 %v1087
        %1195 = vmatprep.subr.bf16.mxu0 %v1084
        %1196 = vmatpush1.bf16.msra.mxu0 %v1083
        %1197 = vmatprep.subr.bf16.mxu0 %v1080
        %1198 = vmatpush1.bf16.msra.mxu0 %v1079
        %1199 = vmatprep.subr.bf16.mxu0 %v1076
        %1200 = vmatpush1.bf16.msra.mxu0 %v1075
        %1201 = vmatprep.subr.bf16.mxu0 %v1072
        %1202 = vmatpush1.bf16.msra.mxu0 %v1071
        %1203 = vmatprep.subr.bf16.mxu0 %v1068
        %1204 = vmatpush1.bf16.msra.mxu0 %v1067
        %1205 = vmatprep.subr.bf16.mxu0 %v1064
        %1206 = vmatpush1.bf16.msra.mxu0 %v1063
        %1207 = vmatprep.subr.bf16.mxu0 %v1124
        %1208 = vmatpush2.bf16.msra.mxu0 %v1123
        %1209 = vmatprep.subr.bf16.mxu0 %v1120
        %1210 = vmatpush2.bf16.msra.mxu0 %v1119
        %1211 = vmatprep.subr.bf16.mxu0 %v1116
        %1212 = vmatpush2.bf16.msra.mxu0 %v1115
        %1213 = vmatprep.subr.bf16.mxu0 %v1112
        %1214 = vmatpush2.bf16.msra.mxu0 %v1111
        %1215 = vmatprep.subr.bf16.mxu0 %v1108
        %1216 = vmatpush2.bf16.msra.mxu0 %v1107
        %1217 = vmatprep.subr.bf16.mxu0 %v1104
        %1218 = vmatpush2.bf16.msra.mxu0 %v1103
        %1219 = vmatprep.subr.bf16.mxu0 %v1100
        %1220 = vmatpush2.bf16.msra.mxu0 %v1099
        %1221 = vmatprep.subr.bf16.mxu0 %v1096
        %1222 = vmatpush2.bf16.msra.mxu0 %v1095
        %1223 = vmatprep.mubr.bf16.mxu0 %v337
        %1224 = vmatmul.mubr.bf16.gmra.mxu0 %v336
        %v1225 = vpop.f32.mrf.mxu0
        %v1226 = vadd.f32 %v824, %v1225
        %v1227 = vpop.f32.mrf.mxu0
        %v1228 = vadd.f32 %v826, %v1227
        %v1229 = vpop.f32.mrf.mxu0
        %v1230 = vpop.f32.mrf.mxu0
        %1231 = vdwg.mxu0
        %1232 = vmatprep.subr.bf16.mxu0 %v1094
        %1233 = vmatpush1.bf16.msra.mxu0 %v1093
        %1234 = vmatprep.subr.bf16.mxu0 %v1090
        %1235 = vmatpush1.bf16.msra.mxu0 %v1089
        %1236 = vmatprep.subr.bf16.mxu0 %v1086
        %1237 = vmatpush1.bf16.msra.mxu0 %v1085
        %1238 = vmatprep.subr.bf16.mxu0 %v1082
        %1239 = vmatpush1.bf16.msra.mxu0 %v1081
        %1240 = vmatprep.subr.bf16.mxu0 %v1078
        %1241 = vmatpush1.bf16.msra.mxu0 %v1077
        %1242 = vmatprep.subr.bf16.mxu0 %v1074
        %1243 = vmatpush1.bf16.msra.mxu0 %v1073
        %1244 = vmatprep.subr.bf16.mxu0 %v1070
        %1245 = vmatpush1.bf16.msra.mxu0 %v1069
        %1246 = vmatprep.subr.bf16.mxu0 %v1066
        %1247 = vmatpush1.bf16.msra.mxu0 %v1065
        %1248 = vmatprep.subr.bf16.mxu0 %v1126
        %1249 = vmatpush2.bf16.msra.mxu0 %v1125
        %1250 = vmatprep.subr.bf16.mxu0 %v1122
        %1251 = vmatpush2.bf16.msra.mxu0 %v1121
        %1252 = vmatprep.subr.bf16.mxu0 %v1118
        %1253 = vmatpush2.bf16.msra.mxu0 %v1117
        %1254 = vmatprep.subr.bf16.mxu0 %v1114
        %1255 = vmatpush2.bf16.msra.mxu0 %v1113
        %1256 = vmatprep.subr.bf16.mxu0 %v1110
        %1257 = vmatpush2.bf16.msra.mxu0 %v1109
        %1258 = vmatprep.subr.bf16.mxu0 %v1106
        %1259 = vmatpush2.bf16.msra.mxu0 %v1105
        %1260 = vmatprep.subr.bf16.mxu0 %v1102
        %1261 = vmatpush2.bf16.msra.mxu0 %v1101
        %1262 = vmatprep.subr.bf16.mxu0 %v1098
        %1263 = vmatpush2.bf16.msra.mxu0 %v1097
        %1264 = vmatprep.mubr.bf16.mxu0 %v337
        %1265 = vmatmul.mubr.bf16.gmra.mxu0 %v336
        %v1266 = vpop.f32.mrf.mxu0
        %v1267 = vadd.f32 %v865, %v1266
        %v1268 = vpop.f32.mrf.mxu0
        %v1269 = vadd.f32 %v867, %v1268
        %v1270 = vpop.f32.mrf.mxu0
        %v1271 = vpop.f32.mrf.mxu0
        %1272 = vdwg.mxu0
        %v1273 = vpack.c.bf16 %v334, %v334
        %v1274 = vpack.c.bf16 %v335, %v335
        %s1275 = scalar_lea.vmem [#allocation5], 1024
        %v1276 = vld [vmem:[%s1275] sm:$0xff]
        %v1277 = vld [vmem:[%s1275 + $0x8] sm:$0xff]
        %v1278 = vld [vmem:[%s1275 + $0x10] sm:$0xff]
        %v1279 = vld [vmem:[%s1275 + $0x18] sm:$0xff]
        %v1280 = vld [vmem:[%s1275 + $0x20] sm:$0xff]
        %v1281 = vld [vmem:[%s1275 + $0x28] sm:$0xff]
        %v1282 = vld [vmem:[%s1275 + $0x30] sm:$0xff]
        %v1283 = vld [vmem:[%s1275 + $0x38] sm:$0xff]
        %v1284 = vld [vmem:[%s1275 + $0x40] sm:$0xff]
        %v1285 = vld [vmem:[%s1275 + $0x48] sm:$0xff]
        %v1286 = vld [vmem:[%s1275 + $0x50] sm:$0xff]
        %v1287 = vld [vmem:[%s1275 + $0x58] sm:$0xff]
        %v1288 = vld [vmem:[%s1275 + $0x60] sm:$0xff]
        %v1289 = vld [vmem:[%s1275 + $0x68] sm:$0xff]
        %v1290 = vld [vmem:[%s1275 + $0x70] sm:$0xff]
        %v1291 = vld [vmem:[%s1275 + $0x78] sm:$0xff]
        %v1292 = vld [vmem:[%s1275 + $0x80] sm:$0xff]
        %v1293 = vld [vmem:[%s1275 + $0x88] sm:$0xff]
        %v1294 = vld [vmem:[%s1275 + $0x90] sm:$0xff]
        %v1295 = vld [vmem:[%s1275 + $0x98] sm:$0xff]
        %v1296 = vld [vmem:[%s1275 + $0xa0] sm:$0xff]
        %v1297 = vld [vmem:[%s1275 + $0xa8] sm:$0xff]
        %v1298 = vld [vmem:[%s1275 + $0xb0] sm:$0xff]
        %v1299 = vld [vmem:[%s1275 + $0xb8] sm:$0xff]
        %v1300 = vld [vmem:[%s1275 + $0xc0] sm:$0xff]
        %v1301 = vld [vmem:[%s1275 + $0xc8] sm:$0xff]
        %v1302 = vld [vmem:[%s1275 + $0xd0] sm:$0xff]
        %v1303 = vld [vmem:[%s1275 + $0xd8] sm:$0xff]
        %v1304 = vld [vmem:[%s1275 + $0xe0] sm:$0xff]
        %v1305 = vld [vmem:[%s1275 + $0xe8] sm:$0xff]
        %v1306 = vld [vmem:[%s1275 + $0xf0] sm:$0xff]
        %v1307 = vld [vmem:[%s1275 + $0xf8] sm:$0xff]
        %v1308 = vld [vmem:[%s1275 + $0x100] sm:$0xff]
        %v1309 = vld [vmem:[%s1275 + $0x108] sm:$0xff]
        %v1310 = vld [vmem:[%s1275 + $0x110] sm:$0xff]
        %v1311 = vld [vmem:[%s1275 + $0x118] sm:$0xff]
        %v1312 = vld [vmem:[%s1275 + $0x120] sm:$0xff]
        %v1313 = vld [vmem:[%s1275 + $0x128] sm:$0xff]
        %v1314 = vld [vmem:[%s1275 + $0x130] sm:$0xff]
        %v1315 = vld [vmem:[%s1275 + $0x138] sm:$0xff]
        %v1316 = vld [vmem:[%s1275 + $0x140] sm:$0xff]
        %v1317 = vld [vmem:[%s1275 + $0x148] sm:$0xff]
        %v1318 = vld [vmem:[%s1275 + $0x150] sm:$0xff]
        %v1319 = vld [vmem:[%s1275 + $0x158] sm:$0xff]
        %v1320 = vld [vmem:[%s1275 + $0x160] sm:$0xff]
        %v1321 = vld [vmem:[%s1275 + $0x168] sm:$0xff]
        %v1322 = vld [vmem:[%s1275 + $0x170] sm:$0xff]
        %v1323 = vld [vmem:[%s1275 + $0x178] sm:$0xff]
        %v1324 = vld [vmem:[%s1275 + $0x180] sm:$0xff]
        %v1325 = vld [vmem:[%s1275 + $0x188] sm:$0xff]
        %v1326 = vld [vmem:[%s1275 + $0x190] sm:$0xff]
        %v1327 = vld [vmem:[%s1275 + $0x198] sm:$0xff]
        %v1328 = vld [vmem:[%s1275 + $0x1a0] sm:$0xff]
        %v1329 = vld [vmem:[%s1275 + $0x1a8] sm:$0xff]
        %v1330 = vld [vmem:[%s1275 + $0x1b0] sm:$0xff]
        %v1331 = vld [vmem:[%s1275 + $0x1b8] sm:$0xff]
        %v1332 = vld [vmem:[%s1275 + $0x1c0] sm:$0xff]
        %v1333 = vld [vmem:[%s1275 + $0x1c8] sm:$0xff]
        %v1334 = vld [vmem:[%s1275 + $0x1d0] sm:$0xff]
        %v1335 = vld [vmem:[%s1275 + $0x1d8] sm:$0xff]
        %v1336 = vld [vmem:[%s1275 + $0x1e0] sm:$0xff]
        %v1337 = vld [vmem:[%s1275 + $0x1e8] sm:$0xff]
        %v1338 = vld [vmem:[%s1275 + $0x1f0] sm:$0xff]
        %v1339 = vld [vmem:[%s1275 + $0x1f8] sm:$0xff]
        %v1404 = vunpack.c.l.b16 %v1276
        %v1405 = vunpack.c.h.b16 %v1276
        %v1406 = vunpack.c.l.b16 %v1277
        %v1407 = vunpack.c.h.b16 %v1277
        %v1408 = vunpack.c.l.b16 %v1278
        %v1409 = vunpack.c.h.b16 %v1278
        %v1410 = vunpack.c.l.b16 %v1279
        %v1411 = vunpack.c.h.b16 %v1279
        %v1412 = vunpack.c.l.b16 %v1280
        %v1413 = vunpack.c.h.b16 %v1280
        %v1414 = vunpack.c.l.b16 %v1281
        %v1415 = vunpack.c.h.b16 %v1281
        %v1416 = vunpack.c.l.b16 %v1282
        %v1417 = vunpack.c.h.b16 %v1282
        %v1418 = vunpack.c.l.b16 %v1283
        %v1419 = vunpack.c.h.b16 %v1283
        %v1420 = vunpack.c.l.b16 %v1284
        %v1421 = vunpack.c.h.b16 %v1284
        %v1422 = vunpack.c.l.b16 %v1285
        %v1423 = vunpack.c.h.b16 %v1285
        %v1424 = vunpack.c.l.b16 %v1286
        %v1425 = vunpack.c.h.b16 %v1286
        %v1426 = vunpack.c.l.b16 %v1287
        %v1427 = vunpack.c.h.b16 %v1287
        %v1428 = vunpack.c.l.b16 %v1288
        %v1429 = vunpack.c.h.b16 %v1288
        %v1430 = vunpack.c.l.b16 %v1289
        %v1431 = vunpack.c.h.b16 %v1289
        %v1432 = vunpack.c.l.b16 %v1290
        %v1433 = vunpack.c.h.b16 %v1290
        %v1434 = vunpack.c.l.b16 %v1291
        %v1435 = vunpack.c.h.b16 %v1291
        %v1436 = vunpack.c.l.b16 %v1292
        %v1437 = vunpack.c.h.b16 %v1292
        %v1438 = vunpack.c.l.b16 %v1293
        %v1439 = vunpack.c.h.b16 %v1293
        %v1440 = vunpack.c.l.b16 %v1294
        %v1441 = vunpack.c.h.b16 %v1294
        %v1442 = vunpack.c.l.b16 %v1295
        %v1443 = vunpack.c.h.b16 %v1295
        %v1444 = vunpack.c.l.b16 %v1296
        %v1445 = vunpack.c.h.b16 %v1296
        %v1446 = vunpack.c.l.b16 %v1297
        %v1447 = vunpack.c.h.b16 %v1297
        %v1448 = vunpack.c.l.b16 %v1298
        %v1449 = vunpack.c.h.b16 %v1298
        %v1450 = vunpack.c.l.b16 %v1299
        %v1451 = vunpack.c.h.b16 %v1299
        %v1452 = vunpack.c.l.b16 %v1300
        %v1453 = vunpack.c.h.b16 %v1300
        %v1454 = vunpack.c.l.b16 %v1301
        %v1455 = vunpack.c.h.b16 %v1301
        %v1456 = vunpack.c.l.b16 %v1302
        %v1457 = vunpack.c.h.b16 %v1302
        %v1458 = vunpack.c.l.b16 %v1303
        %v1459 = vunpack.c.h.b16 %v1303
        %v1460 = vunpack.c.l.b16 %v1304
        %v1461 = vunpack.c.h.b16 %v1304
        %v1462 = vunpack.c.l.b16 %v1305
        %v1463 = vunpack.c.h.b16 %v1305
        %v1464 = vunpack.c.l.b16 %v1306
        %v1465 = vunpack.c.h.b16 %v1306
        %v1466 = vunpack.c.l.b16 %v1307
        %v1467 = vunpack.c.h.b16 %v1307
        %v1468 = vunpack.c.l.b16 %v1308
        %v1469 = vunpack.c.h.b16 %v1308
        %v1470 = vunpack.c.l.b16 %v1309
        %v1471 = vunpack.c.h.b16 %v1309
        %v1472 = vunpack.c.l.b16 %v1310
        %v1473 = vunpack.c.h.b16 %v1310
        %v1474 = vunpack.c.l.b16 %v1311
        %v1475 = vunpack.c.h.b16 %v1311
        %v1476 = vunpack.c.l.b16 %v1312
        %v1477 = vunpack.c.h.b16 %v1312
        %v1478 = vunpack.c.l.b16 %v1313
        %v1479 = vunpack.c.h.b16 %v1313
        %v1480 = vunpack.c.l.b16 %v1314
        %v1481 = vunpack.c.h.b16 %v1314
        %v1482 = vunpack.c.l.b16 %v1315
        %v1483 = vunpack.c.h.b16 %v1315
        %v1484 = vunpack.c.l.b16 %v1316
        %v1485 = vunpack.c.h.b16 %v1316
        %v1486 = vunpack.c.l.b16 %v1317
        %v1487 = vunpack.c.h.b16 %v1317
        %v1488 = vunpack.c.l.b16 %v1318
        %v1489 = vunpack.c.h.b16 %v1318
        %v1490 = vunpack.c.l.b16 %v1319
        %v1491 = vunpack.c.h.b16 %v1319
        %v1492 = vunpack.c.l.b16 %v1320
        %v1493 = vunpack.c.h.b16 %v1320
        %v1494 = vunpack.c.l.b16 %v1321
        %v1495 = vunpack.c.h.b16 %v1321
        %v1496 = vunpack.c.l.b16 %v1322
        %v1497 = vunpack.c.h.b16 %v1322
        %v1498 = vunpack.c.l.b16 %v1323
        %v1499 = vunpack.c.h.b16 %v1323
        %v1500 = vunpack.c.l.b16 %v1324
        %v1501 = vunpack.c.h.b16 %v1324
        %v1502 = vunpack.c.l.b16 %v1325
        %v1503 = vunpack.c.h.b16 %v1325
        %v1504 = vunpack.c.l.b16 %v1326
        %v1505 = vunpack.c.h.b16 %v1326
        %v1506 = vunpack.c.l.b16 %v1327
        %v1507 = vunpack.c.h.b16 %v1327
        %v1508 = vunpack.c.l.b16 %v1328
        %v1509 = vunpack.c.h.b16 %v1328
        %v1510 = vunpack.c.l.b16 %v1329
        %v1511 = vunpack.c.h.b16 %v1329
        %v1512 = vunpack.c.l.b16 %v1330
        %v1513 = vunpack.c.h.b16 %v1330
        %v1514 = vunpack.c.l.b16 %v1331
        %v1515 = vunpack.c.h.b16 %v1331
        %v1516 = vunpack.c.l.b16 %v1332
        %v1517 = vunpack.c.h.b16 %v1332
        %v1518 = vunpack.c.l.b16 %v1333
        %v1519 = vunpack.c.h.b16 %v1333
        %v1520 = vunpack.c.l.b16 %v1334
        %v1521 = vunpack.c.h.b16 %v1334
        %v1522 = vunpack.c.l.b16 %v1335
        %v1523 = vunpack.c.h.b16 %v1335
        %v1524 = vunpack.c.l.b16 %v1336
        %v1525 = vunpack.c.h.b16 %v1336
        %v1526 = vunpack.c.l.b16 %v1337
        %v1527 = vunpack.c.h.b16 %v1337
        %v1528 = vunpack.c.l.b16 %v1338
        %v1529 = vunpack.c.h.b16 %v1338
        %v1530 = vunpack.c.l.b16 %v1339
        %v1531 = vunpack.c.h.b16 %v1339
        %v1532 = vpack.c.b16 %v1408, %v1404
        %v1533 = vpack.c.b16 %v1409, %v1405
        %v1534 = vpack.c.b16 %v1410, %v1406
        %v1535 = vpack.c.b16 %v1411, %v1407
        %v1536 = vpack.c.b16 %v1416, %v1412
        %v1537 = vpack.c.b16 %v1417, %v1413
        %v1538 = vpack.c.b16 %v1418, %v1414
        %v1539 = vpack.c.b16 %v1419, %v1415
        %v1540 = vpack.c.b16 %v1424, %v1420
        %v1541 = vpack.c.b16 %v1425, %v1421
        %v1542 = vpack.c.b16 %v1426, %v1422
        %v1543 = vpack.c.b16 %v1427, %v1423
        %v1544 = vpack.c.b16 %v1432, %v1428
        %v1545 = vpack.c.b16 %v1433, %v1429
        %v1546 = vpack.c.b16 %v1434, %v1430
        %v1547 = vpack.c.b16 %v1435, %v1431
        %v1548 = vpack.c.b16 %v1440, %v1436
        %v1549 = vpack.c.b16 %v1441, %v1437
        %v1550 = vpack.c.b16 %v1442, %v1438
        %v1551 = vpack.c.b16 %v1443, %v1439
        %v1552 = vpack.c.b16 %v1448, %v1444
        %v1553 = vpack.c.b16 %v1449, %v1445
        %v1554 = vpack.c.b16 %v1450, %v1446
        %v1555 = vpack.c.b16 %v1451, %v1447
        %v1556 = vpack.c.b16 %v1456, %v1452
        %v1557 = vpack.c.b16 %v1457, %v1453
        %v1558 = vpack.c.b16 %v1458, %v1454
        %v1559 = vpack.c.b16 %v1459, %v1455
        %v1560 = vpack.c.b16 %v1464, %v1460
        %v1561 = vpack.c.b16 %v1465, %v1461
        %v1562 = vpack.c.b16 %v1466, %v1462
        %v1563 = vpack.c.b16 %v1467, %v1463
        %v1564 = vpack.c.b16 %v1472, %v1468
        %v1565 = vpack.c.b16 %v1473, %v1469
        %v1566 = vpack.c.b16 %v1474, %v1470
        %v1567 = vpack.c.b16 %v1475, %v1471
        %v1568 = vpack.c.b16 %v1480, %v1476
        %v1569 = vpack.c.b16 %v1481, %v1477
        %v1570 = vpack.c.b16 %v1482, %v1478
        %v1571 = vpack.c.b16 %v1483, %v1479
        %v1572 = vpack.c.b16 %v1488, %v1484
        %v1573 = vpack.c.b16 %v1489, %v1485
        %v1574 = vpack.c.b16 %v1490, %v1486
        %v1575 = vpack.c.b16 %v1491, %v1487
        %v1576 = vpack.c.b16 %v1496, %v1492
        %v1577 = vpack.c.b16 %v1497, %v1493
        %v1578 = vpack.c.b16 %v1498, %v1494
        %v1579 = vpack.c.b16 %v1499, %v1495
        %v1580 = vpack.c.b16 %v1504, %v1500
        %v1581 = vpack.c.b16 %v1505, %v1501
        %v1582 = vpack.c.b16 %v1506, %v1502
        %v1583 = vpack.c.b16 %v1507, %v1503
        %v1584 = vpack.c.b16 %v1512, %v1508
        %v1585 = vpack.c.b16 %v1513, %v1509
        %v1586 = vpack.c.b16 %v1514, %v1510
        %v1587 = vpack.c.b16 %v1515, %v1511
        %v1588 = vpack.c.b16 %v1520, %v1516
        %v1589 = vpack.c.b16 %v1521, %v1517
        %v1590 = vpack.c.b16 %v1522, %v1518
        %v1591 = vpack.c.b16 %v1523, %v1519
        %v1592 = vpack.c.b16 %v1528, %v1524
        %v1593 = vpack.c.b16 %v1529, %v1525
        %v1594 = vpack.c.b16 %v1530, %v1526
        %v1595 = vpack.c.b16 %v1531, %v1527
        %1660 = vmatprep.subr.bf16.mxu0 %v1561
        %1661 = vmatpush1.bf16.msra.mxu0 %v1560
        %1662 = vmatprep.subr.bf16.mxu0 %v1557
        %1663 = vmatpush1.bf16.msra.mxu0 %v1556
        %1664 = vmatprep.subr.bf16.mxu0 %v1553
        %1665 = vmatpush1.bf16.msra.mxu0 %v1552
        %1666 = vmatprep.subr.bf16.mxu0 %v1549
        %1667 = vmatpush1.bf16.msra.mxu0 %v1548
        %1668 = vmatprep.subr.bf16.mxu0 %v1545
        %1669 = vmatpush1.bf16.msra.mxu0 %v1544
        %1670 = vmatprep.subr.bf16.mxu0 %v1541
        %1671 = vmatpush1.bf16.msra.mxu0 %v1540
        %1672 = vmatprep.subr.bf16.mxu0 %v1537
        %1673 = vmatpush1.bf16.msra.mxu0 %v1536
        %1674 = vmatprep.subr.bf16.mxu0 %v1533
        %1675 = vmatpush1.bf16.msra.mxu0 %v1532
        %1676 = vmatprep.subr.bf16.mxu0 %v1593
        %1677 = vmatpush2.bf16.msra.mxu0 %v1592
        %1678 = vmatprep.subr.bf16.mxu0 %v1589
        %1679 = vmatpush2.bf16.msra.mxu0 %v1588
        %1680 = vmatprep.subr.bf16.mxu0 %v1585
        %1681 = vmatpush2.bf16.msra.mxu0 %v1584
        %1682 = vmatprep.subr.bf16.mxu0 %v1581
        %1683 = vmatpush2.bf16.msra.mxu0 %v1580
        %1684 = vmatprep.subr.bf16.mxu0 %v1577
        %1685 = vmatpush2.bf16.msra.mxu0 %v1576
        %1686 = vmatprep.subr.bf16.mxu0 %v1573
        %1687 = vmatpush2.bf16.msra.mxu0 %v1572
        %1688 = vmatprep.subr.bf16.mxu0 %v1569
        %1689 = vmatpush2.bf16.msra.mxu0 %v1568
        %1690 = vmatprep.subr.bf16.mxu0 %v1565
        %1691 = vmatpush2.bf16.msra.mxu0 %v1564
        %1692 = vmatprep.mubr.bf16.mxu0 %v1274
        %1693 = vmatmul.mubr.bf16.gmra.mxu0 %v1273
        %v1694 = vpop.f32.mrf.mxu0
        %v1695 = vadd.f32 0.0, %v1694
        %v1696 = vpop.f32.mrf.mxu0
        %v1697 = vadd.f32 0.0, %v1696
        %v1698 = vpop.f32.mrf.mxu0
        %v1699 = vpop.f32.mrf.mxu0
        %1700 = vdwg.mxu0
        %1701 = vmatprep.subr.bf16.mxu0 %v1563
        %1702 = vmatpush1.bf16.msra.mxu0 %v1562
        %1703 = vmatprep.subr.bf16.mxu0 %v1559
        %1704 = vmatpush1.bf16.msra.mxu0 %v1558
        %1705 = vmatprep.subr.bf16.mxu0 %v1555
        %1706 = vmatpush1.bf16.msra.mxu0 %v1554
        %1707 = vmatprep.subr.bf16.mxu0 %v1551
        %1708 = vmatpush1.bf16.msra.mxu0 %v1550
        %1709 = vmatprep.subr.bf16.mxu0 %v1547
        %1710 = vmatpush1.bf16.msra.mxu0 %v1546
        %1711 = vmatprep.subr.bf16.mxu0 %v1543
        %1712 = vmatpush1.bf16.msra.mxu0 %v1542
        %1713 = vmatprep.subr.bf16.mxu0 %v1539
        %1714 = vmatpush1.bf16.msra.mxu0 %v1538
        %1715 = vmatprep.subr.bf16.mxu0 %v1535
        %1716 = vmatpush1.bf16.msra.mxu0 %v1534
        %1717 = vmatprep.subr.bf16.mxu0 %v1595
        %1718 = vmatpush2.bf16.msra.mxu0 %v1594
        %1719 = vmatprep.subr.bf16.mxu0 %v1591
        %1720 = vmatpush2.bf16.msra.mxu0 %v1590
        %1721 = vmatprep.subr.bf16.mxu0 %v1587
        %1722 = vmatpush2.bf16.msra.mxu0 %v1586
        %1723 = vmatprep.subr.bf16.mxu0 %v1583
        %1724 = vmatpush2.bf16.msra.mxu0 %v1582
        %1725 = vmatprep.subr.bf16.mxu0 %v1579
        %1726 = vmatpush2.bf16.msra.mxu0 %v1578
        %1727 = vmatprep.subr.bf16.mxu0 %v1575
        %1728 = vmatpush2.bf16.msra.mxu0 %v1574
        %1729 = vmatprep.subr.bf16.mxu0 %v1571
        %1730 = vmatpush2.bf16.msra.mxu0 %v1570
        %1731 = vmatprep.subr.bf16.mxu0 %v1567
        %1732 = vmatpush2.bf16.msra.mxu0 %v1566
        %1733 = vmatprep.mubr.bf16.mxu0 %v1274
        %1734 = vmatmul.mubr.bf16.gmra.mxu0 %v1273
        %v1735 = vpop.f32.mrf.mxu0
        %v1736 = vadd.f32 0.0, %v1735
        %v1737 = vpop.f32.mrf.mxu0
        %v1738 = vadd.f32 0.0, %v1737
        %v1739 = vpop.f32.mrf.mxu0
        %v1740 = vpop.f32.mrf.mxu0
        %1741 = vdwg.mxu0
        %v1742 = vadd.f32 %v1226, %v1695
        %v1743 = vadd.f32 %v1228, %v1697
        %v1744 = vadd.f32 %v1267, %v1736
        %v1745 = vadd.f32 %v1269, %v1738
        %v1746 = vld [vmem:[#allocation7] sm:$0xf]
        %v1748 = vlaneseq
        %v1749 = vshrl.u32 %v1748, 7
        %v1750 = vsub.s32 0, %v1749
        %v1751 = vrot.slane %v1746, %v1750
        %v1752 = vlaneseq
        %v1753 = vshrl.u32 %v1752, 7
        %v1754 = vsub.s32 1, %v1753
        %v1755 = vrot.slane %v1746, %v1754
        %v1756 = vlaneseq
        %v1757 = vshrl.u32 %v1756, 7
        %v1758 = vsub.s32 2, %v1757
        %v1759 = vrot.slane %v1746, %v1758
        %v1760 = vlaneseq
        %v1761 = vshrl.u32 %v1760, 7
        %v1762 = vsub.s32 3, %v1761
        %v1763 = vrot.slane %v1746, %v1762
        %v1768 = vadd.f32 %v1742, %v1751
        %v1769 = vadd.f32 %v1743, %v1755
        %v1770 = vadd.f32 %v1744, %v1759
        %v1771 = vadd.f32 %v1745, %v1763
        %v1772 = vmax.f32 %v1768, 0.0
        %v1773 = vmax.f32 %v1769, 0.0
        %v1774 = vmax.f32 %v1770, 0.0
        %v1775 = vmax.f32 %v1771, 0.0
        %v1776 = vpack.c.bf16 %v1772, %v1772
        %v1777 = vpack.c.bf16 %v1773, %v1773
        %v1778 = vpack.c.bf16 %v1774, %v1774
        %v1779 = vpack.c.bf16 %v1775, %v1775
        %v1780 = vld [vmem:[#allocation8] sm:$0xf]
        %v1781 = vld [vmem:[#allocation8 + $0x4] sm:$0xf]
        %v1782 = vld [vmem:[#allocation8 + $0x8] sm:$0xf]
        %v1783 = vld [vmem:[#allocation8 + $0xc] sm:$0xf]
        %v1784 = vld [vmem:[#allocation8 + $0x10] sm:$0xf]
        %v1785 = vld [vmem:[#allocation8 + $0x14] sm:$0xf]
        %v1786 = vld [vmem:[#allocation8 + $0x18] sm:$0xf]
        %v1787 = vld [vmem:[#allocation8 + $0x1c] sm:$0xf]
        %v1788 = vld [vmem:[#allocation8 + $0x20] sm:$0xf]
        %v1789 = vld [vmem:[#allocation8 + $0x24] sm:$0xf]
        %v1790 = vld [vmem:[#allocation8 + $0x28] sm:$0xf]
        %v1791 = vld [vmem:[#allocation8 + $0x2c] sm:$0xf]
        %v1792 = vld [vmem:[#allocation8 + $0x30] sm:$0xf]
        %v1793 = vld [vmem:[#allocation8 + $0x34] sm:$0xf]
        %v1794 = vld [vmem:[#allocation8 + $0x38] sm:$0xf]
        %v1795 = vld [vmem:[#allocation8 + $0x3c] sm:$0xf]
        %v1796 = vld [vmem:[#allocation8 + $0x40] sm:$0xf]
        %v1797 = vld [vmem:[#allocation8 + $0x44] sm:$0xf]
        %v1798 = vld [vmem:[#allocation8 + $0x48] sm:$0xf]
        %v1799 = vld [vmem:[#allocation8 + $0x4c] sm:$0xf]
        %v1800 = vld [vmem:[#allocation8 + $0x50] sm:$0xf]
        %v1801 = vld [vmem:[#allocation8 + $0x54] sm:$0xf]
        %v1802 = vld [vmem:[#allocation8 + $0x58] sm:$0xf]
        %v1803 = vld [vmem:[#allocation8 + $0x5c] sm:$0xf]
        %v1804 = vld [vmem:[#allocation8 + $0x60] sm:$0xf]
        %v1805 = vld [vmem:[#allocation8 + $0x64] sm:$0xf]
        %v1806 = vld [vmem:[#allocation8 + $0x68] sm:$0xf]
        %v1807 = vld [vmem:[#allocation8 + $0x6c] sm:$0xf]
        %v1808 = vld [vmem:[#allocation8 + $0x70] sm:$0xf]
        %v1809 = vld [vmem:[#allocation8 + $0x74] sm:$0xf]
        %v1810 = vld [vmem:[#allocation8 + $0x78] sm:$0xf]
        %v1811 = vld [vmem:[#allocation8 + $0x7c] sm:$0xf]
        %v1812 = vld [vmem:[#allocation8 + $0x80] sm:$0xf]
        %v1813 = vld [vmem:[#allocation8 + $0x84] sm:$0xf]
        %v1814 = vld [vmem:[#allocation8 + $0x88] sm:$0xf]
        %v1815 = vld [vmem:[#allocation8 + $0x8c] sm:$0xf]
        %v1816 = vld [vmem:[#allocation8 + $0x90] sm:$0xf]
        %v1817 = vld [vmem:[#allocation8 + $0x94] sm:$0xf]
        %v1818 = vld [vmem:[#allocation8 + $0x98] sm:$0xf]
        %v1819 = vld [vmem:[#allocation8 + $0x9c] sm:$0xf]
        %v1820 = vld [vmem:[#allocation8 + $0xa0] sm:$0xf]
        %v1821 = vld [vmem:[#allocation8 + $0xa4] sm:$0xf]
        %v1822 = vld [vmem:[#allocation8 + $0xa8] sm:$0xf]
        %v1823 = vld [vmem:[#allocation8 + $0xac] sm:$0xf]
        %v1824 = vld [vmem:[#allocation8 + $0xb0] sm:$0xf]
        %v1825 = vld [vmem:[#allocation8 + $0xb4] sm:$0xf]
        %v1826 = vld [vmem:[#allocation8 + $0xb8] sm:$0xf]
        %v1827 = vld [vmem:[#allocation8 + $0xbc] sm:$0xf]
        %v1828 = vld [vmem:[#allocation8 + $0xc0] sm:$0xf]
        %v1829 = vld [vmem:[#allocation8 + $0xc4] sm:$0xf]
        %v1830 = vld [vmem:[#allocation8 + $0xc8] sm:$0xf]
        %v1831 = vld [vmem:[#allocation8 + $0xcc] sm:$0xf]
        %v1832 = vld [vmem:[#allocation8 + $0xd0] sm:$0xf]
        %v1833 = vld [vmem:[#allocation8 + $0xd4] sm:$0xf]
        %v1834 = vld [vmem:[#allocation8 + $0xd8] sm:$0xf]
        %v1835 = vld [vmem:[#allocation8 + $0xdc] sm:$0xf]
        %v1836 = vld [vmem:[#allocation8 + $0xe0] sm:$0xf]
        %v1837 = vld [vmem:[#allocation8 + $0xe4] sm:$0xf]
        %v1838 = vld [vmem:[#allocation8 + $0xe8] sm:$0xf]
        %v1839 = vld [vmem:[#allocation8 + $0xec] sm:$0xf]
        %v1840 = vld [vmem:[#allocation8 + $0xf0] sm:$0xf]
        %v1841 = vld [vmem:[#allocation8 + $0xf4] sm:$0xf]
        %v1842 = vld [vmem:[#allocation8 + $0xf8] sm:$0xf]
        %v1843 = vld [vmem:[#allocation8 + $0xfc] sm:$0xf]
        %v1844 = vld [vmem:[%s4] sm:$0x1]
        %v1846 = vlaneseq
        %v1847 = vshrl.u32 %v1846, 7
        %v1848 = vsub.s32 0, %v1847
        %v1849 = vrot.slane %v1844, %v1848
        %v1915 = vunpack.c.l.b16 %v1780
        %v1916 = vunpack.c.l.b16 %v1781
        %v1917 = vunpack.c.l.b16 %v1782
        %v1918 = vunpack.c.l.b16 %v1783
        %v1919 = vunpack.c.l.b16 %v1784
        %v1920 = vunpack.c.l.b16 %v1785
        %v1921 = vunpack.c.l.b16 %v1786
        %v1922 = vunpack.c.l.b16 %v1787
        %v1923 = vunpack.c.l.b16 %v1788
        %v1924 = vunpack.c.l.b16 %v1789
        %v1925 = vunpack.c.l.b16 %v1790
        %v1926 = vunpack.c.l.b16 %v1791
        %v1927 = vunpack.c.l.b16 %v1792
        %v1928 = vunpack.c.l.b16 %v1793
        %v1929 = vunpack.c.l.b16 %v1794
        %v1930 = vunpack.c.l.b16 %v1795
        %v1931 = vunpack.c.l.b16 %v1796
        %v1932 = vunpack.c.l.b16 %v1797
        %v1933 = vunpack.c.l.b16 %v1798
        %v1934 = vunpack.c.l.b16 %v1799
        %v1935 = vunpack.c.l.b16 %v1800
        %v1936 = vunpack.c.l.b16 %v1801
        %v1937 = vunpack.c.l.b16 %v1802
        %v1938 = vunpack.c.l.b16 %v1803
        %v1939 = vunpack.c.l.b16 %v1804
        %v1940 = vunpack.c.l.b16 %v1805
        %v1941 = vunpack.c.l.b16 %v1806
        %v1942 = vunpack.c.l.b16 %v1807
        %v1943 = vunpack.c.l.b16 %v1808
        %v1944 = vunpack.c.l.b16 %v1809
        %v1945 = vunpack.c.l.b16 %v1810
        %v1946 = vunpack.c.l.b16 %v1811
        %v1947 = vunpack.c.l.b16 %v1812
        %v1948 = vunpack.c.l.b16 %v1813
        %v1949 = vunpack.c.l.b16 %v1814
        %v1950 = vunpack.c.l.b16 %v1815
        %v1951 = vunpack.c.l.b16 %v1816
        %v1952 = vunpack.c.l.b16 %v1817
        %v1953 = vunpack.c.l.b16 %v1818
        %v1954 = vunpack.c.l.b16 %v1819
        %v1955 = vunpack.c.l.b16 %v1820
        %v1956 = vunpack.c.l.b16 %v1821
        %v1957 = vunpack.c.l.b16 %v1822
        %v1958 = vunpack.c.l.b16 %v1823
        %v1959 = vunpack.c.l.b16 %v1824
        %v1960 = vunpack.c.l.b16 %v1825
        %v1961 = vunpack.c.l.b16 %v1826
        %v1962 = vunpack.c.l.b16 %v1827
        %v1963 = vunpack.c.l.b16 %v1828
        %v1964 = vunpack.c.l.b16 %v1829
        %v1965 = vunpack.c.l.b16 %v1830
        %v1966 = vunpack.c.l.b16 %v1831
        %v1967 = vunpack.c.l.b16 %v1832
        %v1968 = vunpack.c.l.b16 %v1833
        %v1969 = vunpack.c.l.b16 %v1834
        %v1970 = vunpack.c.l.b16 %v1835
        %v1971 = vunpack.c.l.b16 %v1836
        %v1972 = vunpack.c.l.b16 %v1837
        %v1973 = vunpack.c.l.b16 %v1838
        %v1974 = vunpack.c.l.b16 %v1839
        %v1975 = vunpack.c.l.b16 %v1840
        %v1976 = vunpack.c.l.b16 %v1841
        %v1977 = vunpack.c.l.b16 %v1842
        %v1978 = vunpack.c.l.b16 %v1843
        %v1979 = vpack.c.b16 %v1916, %v1915
        %v1980 = vpack.c.b16 %v1918, %v1917
        %v1981 = vpack.c.b16 %v1920, %v1919
        %v1982 = vpack.c.b16 %v1922, %v1921
        %v1983 = vpack.c.b16 %v1924, %v1923
        %v1984 = vpack.c.b16 %v1926, %v1925
        %v1985 = vpack.c.b16 %v1928, %v1927
        %v1986 = vpack.c.b16 %v1930, %v1929
        %v1987 = vpack.c.b16 %v1932, %v1931
        %v1988 = vpack.c.b16 %v1934, %v1933
        %v1989 = vpack.c.b16 %v1936, %v1935
        %v1990 = vpack.c.b16 %v1938, %v1937
        %v1991 = vpack.c.b16 %v1940, %v1939
        %v1992 = vpack.c.b16 %v1942, %v1941
        %v1993 = vpack.c.b16 %v1944, %v1943
        %v1994 = vpack.c.b16 %v1946, %v1945
        %v1995 = vpack.c.b16 %v1948, %v1947
        %v1996 = vpack.c.b16 %v1950, %v1949
        %v1997 = vpack.c.b16 %v1952, %v1951
        %v1998 = vpack.c.b16 %v1954, %v1953
        %v1999 = vpack.c.b16 %v1956, %v1955
        %v2000 = vpack.c.b16 %v1958, %v1957
        %v2001 = vpack.c.b16 %v1960, %v1959
        %v2002 = vpack.c.b16 %v1962, %v1961
        %v2003 = vpack.c.b16 %v1964, %v1963
        %v2004 = vpack.c.b16 %v1966, %v1965
        %v2005 = vpack.c.b16 %v1968, %v1967
        %v2006 = vpack.c.b16 %v1970, %v1969
        %v2007 = vpack.c.b16 %v1972, %v1971
        %v2008 = vpack.c.b16 %v1974, %v1973
        %v2009 = vpack.c.b16 %v1976, %v1975
        %v2010 = vpack.c.b16 %v1978, %v1977
        %2043 = vmatprep.subr.bf16.mxu0 0
        %2044 = vmatpush1.bf16.msra.mxu0 %v1986
        %2045 = vmatprep.subr.bf16.mxu0 0
        %2046 = vmatpush1.bf16.msra.mxu0 %v1985
        %2047 = vmatprep.subr.bf16.mxu0 0
        %2048 = vmatpush1.bf16.msra.mxu0 %v1984
        %2049 = vmatprep.subr.bf16.mxu0 0
        %2050 = vmatpush1.bf16.msra.mxu0 %v1983
        %2051 = vmatprep.subr.bf16.mxu0 0
        %2052 = vmatpush1.bf16.msra.mxu0 %v1982
        %2053 = vmatprep.subr.bf16.mxu0 0
        %2054 = vmatpush1.bf16.msra.mxu0 %v1981
        %2055 = vmatprep.subr.bf16.mxu0 0
        %2056 = vmatpush1.bf16.msra.mxu0 %v1980
        %2057 = vmatprep.subr.bf16.mxu0 0
        %2058 = vmatpush1.bf16.msra.mxu0 %v1979
        %2059 = vmatprep.subr.bf16.mxu0 0
        %2060 = vmatpush2.bf16.msra.mxu0 %v1994
        %2061 = vmatprep.subr.bf16.mxu0 0
        %2062 = vmatpush2.bf16.msra.mxu0 %v1993
        %2063 = vmatprep.subr.bf16.mxu0 0
        %2064 = vmatpush2.bf16.msra.mxu0 %v1992
        %2065 = vmatprep.subr.bf16.mxu0 0
        %2066 = vmatpush2.bf16.msra.mxu0 %v1991
        %2067 = vmatprep.subr.bf16.mxu0 0
        %2068 = vmatpush2.bf16.msra.mxu0 %v1990
        %2069 = vmatprep.subr.bf16.mxu0 0
        %2070 = vmatpush2.bf16.msra.mxu0 %v1989
        %2071 = vmatprep.subr.bf16.mxu0 0
        %2072 = vmatpush2.bf16.msra.mxu0 %v1988
        %2073 = vmatprep.subr.bf16.mxu0 0
        %2074 = vmatpush2.bf16.msra.mxu0 %v1987
        %2075 = vmatprep.mubr.bf16.mxu0 %v1777
        %2076 = vmatmul.mubr.bf16.gmra.mxu0 %v1776
        %v2077 = vpop.f32.mrf.mxu0
        %v2078 = vadd.f32 %v1849, %v2077
        %v2079 = vpop.f32.mrf.mxu0
        %v2080 = vpop.f32.mrf.mxu0
        %v2081 = vpop.f32.mrf.mxu0
        %2082 = vdwg.mxu0
        %2083 = vmatprep.subr.bf16.mxu0 0
        %2084 = vmatpush1.bf16.msra.mxu0 %v2002
        %2085 = vmatprep.subr.bf16.mxu0 0
        %2086 = vmatpush1.bf16.msra.mxu0 %v2001
        %2087 = vmatprep.subr.bf16.mxu0 0
        %2088 = vmatpush1.bf16.msra.mxu0 %v2000
        %2089 = vmatprep.subr.bf16.mxu0 0
        %2090 = vmatpush1.bf16.msra.mxu0 %v1999
        %2091 = vmatprep.subr.bf16.mxu0 0
        %2092 = vmatpush1.bf16.msra.mxu0 %v1998
        %2093 = vmatprep.subr.bf16.mxu0 0
        %2094 = vmatpush1.bf16.msra.mxu0 %v1997
        %2095 = vmatprep.subr.bf16.mxu0 0
        %2096 = vmatpush1.bf16.msra.mxu0 %v1996
        %2097 = vmatprep.subr.bf16.mxu0 0
        %2098 = vmatpush1.bf16.msra.mxu0 %v1995
        %2099 = vmatprep.subr.bf16.mxu0 0
        %2100 = vmatpush2.bf16.msra.mxu0 %v2010
        %2101 = vmatprep.subr.bf16.mxu0 0
        %2102 = vmatpush2.bf16.msra.mxu0 %v2009
        %2103 = vmatprep.subr.bf16.mxu0 0
        %2104 = vmatpush2.bf16.msra.mxu0 %v2008
        %2105 = vmatprep.subr.bf16.mxu0 0
        %2106 = vmatpush2.bf16.msra.mxu0 %v2007
        %2107 = vmatprep.subr.bf16.mxu0 0
        %2108 = vmatpush2.bf16.msra.mxu0 %v2006
        %2109 = vmatprep.subr.bf16.mxu0 0
        %2110 = vmatpush2.bf16.msra.mxu0 %v2005
        %2111 = vmatprep.subr.bf16.mxu0 0
        %2112 = vmatpush2.bf16.msra.mxu0 %v2004
        %2113 = vmatprep.subr.bf16.mxu0 0
        %2114 = vmatpush2.bf16.msra.mxu0 %v2003
        %2115 = vmatprep.mubr.bf16.mxu0 %v1779
        %2116 = vmatmul.mubr.bf16.gmra.mxu0 %v1778
        %v2117 = vpop.f32.mrf.mxu0
        %v2118 = vadd.f32 %v2078, %v2117
        %v2119 = vpop.f32.mrf.mxu0
        %v2120 = vpop.f32.mrf.mxu0
        %v2121 = vpop.f32.mrf.mxu0
        %2122 = vdwg.mxu0
        %v2123 = vpack.c.bf16 %v2118, %v2118
        %2124 = vst [vmem:[%s310] sm:$0xf] %v2123
        %v2125 = vunpack.c.l.bf16 %v2123
        %v2126 = vmul.f32 %v2125, %v2125
        %2127 = vadd.xlane.f32.xlu0 %v2126
        %v2128 = vpop.xlane.xlu0 %2127
        %vm2129 = vcmask 7168
        %2130 = vst.msk [vmem:[%s320] sm:$0xff] %vm2129, %v2128
        %s2131 = sand.u32 %s144, 1
        %s2132 = scalar_lea.sflag [#allocation4], %s2131
        %s2133 = sand.u32 %s144, 1
        %s2134 = smul.addr %s2133, 4
        %s2135 = scalar_lea.vmem [#allocation10], %s2134
        %p2136 = scmp.lt.s32.totalorder %s26, 1
        %s2137 = scalar_select %p2136, %s26, 1
        %s2138 = smul.addr %s2137, 8
        %s2139 = scalar_lea.vmem %s6, %s2138
        // Predicated region
        $region57: #{tpu_custom_call.1} parent=39 // pred_check
          %p2140 = pneg %p154
        $region58: #{tpu_custom_call.1} parent=39 // pred_check_branch
          %2142 = sbr.rel (%p2140) target = $region60
        $region59: #{tpu_custom_call.1} parent=39 // pred_region
          %s2144 = ssub.s32 64, 64
          %2145 = vsyncadd %s2132, %s2144
          %s2146 = smul.addr %s26, 64
          %s2147 = scalar_lea.hbm %s5, %s2146
          %s2149 = sshll.u32 %s2135, 4
          %s2150 = int_to_ptr.vmem [resolvable:$true] %s2149
          %2152 = dma.vmem_to_hbm [thread:$0]  %s2150, 64, %s2147, %s2132
        $region60: #{tpu_custom_call.1} parent=39 // pred_fallthru
          _
        // Predicated region
        $region61: #{tpu_custom_call.1} parent=39 // pred_check
          %p2153 = pneg %p180
        $region62: #{tpu_custom_call.1} parent=39 // pred_check_branch
          %2155 = sbr.rel (%p2153) target = $region64
        $region63: #{tpu_custom_call.1} parent=39 // pred_region
          _
        $region64: #{tpu_custom_call.1} parent=39 // pred_fallthru
          _
      $region40: #{tpu_custom_call.1} parent=5 // pred_fallthru
        _
      %p2156 = scmp.le.s32.totalorder 2, %s21
      // Predicated region
      $region65: #{tpu_custom_call.1} parent=5 // pred_check
        %p2157 = pneg %p2156
      $region66: #{tpu_custom_call.1} parent=5 // pred_check_branch
        %2159 = sbr.rel (%p2157) target = $region68
      $region67: #{tpu_custom_call.1} parent=5 // pred_region
        %s2160 = ssub.s32 %s21, 2
        // Predicated region
        $region69: #{tpu_custom_call.1} parent=67 // pred_check
          %p2161 = pneg %p160
        $region70: #{tpu_custom_call.1} parent=67 // pred_check_branch
          %2163 = sbr.rel (%p2161) target = $region72
        $region71: #{tpu_custom_call.1} parent=67 // pred_region
          %s2164 = sand.u32 %s145, 1
          %s2165 = scalar_lea.sflag [#allocation4], %s2164
          %s2166 = sand.u32 %s145, 1
          %s2167 = smul.addr %s2166, 4
          %s2168 = scalar_lea.vmem [#allocation10], %s2167
          %2169 = dma.done %s2165, 64
        $region72: #{tpu_custom_call.1} parent=67 // pred_fallthru
          _
        // Predicated region
        $region73: #{tpu_custom_call.1} parent=67 // pred_check
          %p2170 = pneg %p186
        $region74: #{tpu_custom_call.1} parent=67 // pred_check_branch
          %2172 = sbr.rel (%p2170) target = $region76
        $region75: #{tpu_custom_call.1} parent=67 // pred_region
          %p2173 = scmp.lt.s32.totalorder %s27, 1
          %s2174 = scalar_select %p2173, %s27, 1
          %s2175 = smul.addr %s2174, 8
          %s2176 = scalar_lea.vmem %s6, %s2175
        $region76: #{tpu_custom_call.1} parent=67 // pred_fallthru
          _
      $region68: #{tpu_custom_call.1} parent=5 // pred_fallthru
        _
    $region6: #{tpu_custom_call.1} parent=1 // loop_footer
      %s25 = sadd.s32 1, %s21
    $region7: #{tpu_custom_call.1} parent=1 // loop_footer_branch
      %20 = sbr.rel target = $region3
    $region8: #{tpu_custom_call.1} parent=1 // loop_exit
      _
    %2177 = vsyncpa [#allocation3], 1
    %s2178 = scalar_lea.sflag [#allocation3], 1
    %2179 = vsyncpa %s2178, 1
    %2180 = vsyncpa [#allocation6], 1
    %2181 = vsyncpa [#allocation9], 1
    %2182 = vsyncpa [#allocation4], 1
    %s2183 = scalar_lea.sflag [#allocation4], 1
    %2184 = vsyncpa %s2183, 1

</llo_original>
